<compile_context>
chip_gen: v7x
topology: tpu7x:2x2x1
jax: 0.10.0
libtpu: 0.0.40
codegen_flags: <defaults>
</compile_context>

<pallas_src>
import jax
import jax.numpy as jnp
from jax.experimental import pallas as pl
from jax.experimental.pallas import tpu as pltpu

NH = 300        # hidden width (nh in the PyTorch module)
N_RES = 4       # number of SimpleRes blocks
LN_EPS = 1e-5   # nn.LayerNorm default eps


def _round_up(a, b):
    return (a + b - 1) // b * b


def hebbnet_kernel(x_ref, w1_ref, g_ref, b_ref, wres_ref, wout_ref, o_ref):
    # x_ref    : (TB, D_in)        tile of input rows
    # w1_ref   : (D_in, NH)        first linear, (in, out) layout
    # g_ref    : (N_RES, 1, NH)    LayerNorm gammas
    # b_ref    : (N_RES, 1, NH)    LayerNorm betas
    # wres_ref : (N_RES, NH, NH)   residual linears, (in, out) layout
    # wout_ref : (NH, D_out)       final linear, (in, out) layout
    # o_ref    : (TB, D_out)
    h = jnp.tanh(
        jnp.dot(x_ref[...], w1_ref[...], preferred_element_type=jnp.float32)
    )
    for i in range(N_RES):  # static unroll over the 4 SimpleRes blocks
        mu = jnp.mean(h, axis=-1, keepdims=True)
        var = jnp.mean(jnp.square(h - mu), axis=-1, keepdims=True)
        hn = (h - mu) * jax.lax.rsqrt(var + LN_EPS)
        hn = hn * g_ref[i] + b_ref[i]                 # (TB, NH) * (1, NH) + (1, NH)
        h = jnp.tanh(
            jnp.dot(hn, wres_ref[i], preferred_element_type=jnp.float32) + h
        )
    o_ref[...] = jnp.dot(
        h, wout_ref[...], preferred_element_type=jnp.float32
    ).astype(o_ref.dtype)


def simple_hebb_net(x, w1, ln_gamma, ln_beta, w_res, w_out, *, tile_rows=256):
    """SimpleHebbNet forward.  x: (B, D_in) -> (B, D_out)."""
    B, d_in = x.shape
    d_out = w_out.shape[1]

    # Tile over the batch: multiple of 8 (sublane), up to `tile_rows` per step.
    tb = min(tile_rows, _round_up(B, 8))
    bp = _round_up(B, tb)
    if bp != B:
        # Zero-padding is safe: LayerNorm of an all-zero row stays zero
        # (0 * rsqrt(eps)), and padded outputs are sliced off below.
        x = jnp.pad(x, ((0, bp - B), (0, 0)))

    out = pl.pallas_call(
        hebbnet_kernel,
        out_shape=jax.ShapeDtypeStruct((bp, d_out), x.dtype),
        grid_spec=pltpu.PrefetchScalarGridSpec(
            num_scalar_prefetch=0,
            grid=(bp // tb,),
            in_specs=[
                pl.BlockSpec((tb, d_in), lambda r: (r, 0)),
                # Constant index maps -> weights DMA'd once, stay VMEM-resident.
                pl.BlockSpec((d_in, NH), lambda r: (0, 0)),
                pl.BlockSpec((N_RES, 1, NH), lambda r: (0, 0, 0)),
                pl.BlockSpec((N_RES, 1, NH), lambda r: (0, 0, 0)),
                pl.BlockSpec((N_RES, NH, NH), lambda r: (0, 0, 0)),
                pl.BlockSpec((NH, d_out), lambda r: (0, 0)),
            ],
            out_specs=pl.BlockSpec((tb, d_out), lambda r: (r, 0)),
        ),
        compiler_params=pltpu.CompilerParams(
            dimension_semantics=("parallel",),
        ),
    )(x, w1, ln_gamma, ln_beta, w_res, w_out)
    return out[:B]


def ref_forward(x, w1, g, b, w_res, w_out):
    """Pure-JAX reference with identical semantics."""
    h = jnp.tanh(x @ w1)
    for i in range(N_RES):
        mu = jnp.mean(h, axis=-1, keepdims=True)
        var = jnp.mean(jnp.square(h - mu), axis=-1, keepdims=True)
        hn = (h - mu) / jnp.sqrt(var + LN_EPS)
        hn = hn * g[i] + b[i]
        h = jnp.tanh(hn @ w_res[i] + h)
    return h @ w_out


if __name__ == "__main__":
    key = jax.random.PRNGKey(0)
    B, D_IN, D_OUT = 8, 32, 10
    ks = jax.random.split(key, 6)

    x = jax.random.normal(ks[0], (B, D_IN), dtype=jnp.float32)
    # PyTorch nn.Linear(in, out).weight is (out, in); we store (in, out) so the
    # kernel computes x @ W directly (same math as x @ W_torch^T).
    w1 = jax.random.uniform(ks[1], (D_IN, NH), jnp.float32,
                            minval=-1.0, maxval=1.0) / jnp.sqrt(D_IN)
    w_res = jax.random.uniform(ks[2], (N_RES, NH, NH), jnp.float32,
                               minval=-1.0, maxval=1.0) / jnp.sqrt(NH)
    w_out = jax.random.uniform(ks[3], (NH, D_OUT), jnp.float32,
                               minval=-1.0, maxval=1.0) / jnp.sqrt(NH)
    # nn.LayerNorm defaults are gamma=1, beta=0; perturb so the affine path is
    # actually exercised by the correctness check.
    ln_gamma = 1.0 + 0.1 * jax.random.normal(ks[4], (N_RES, 1, NH), jnp.float32)
    ln_beta = 0.1 * jax.random.normal(ks[5], (N_RES, 1, NH), jnp.float32)

    out = simple_hebb_net(x, w1, ln_gamma, ln_beta, w_res, w_out)
    out = jax.block_until_ready(out)

    ref = ref_forward(x, w1, ln_gamma, ln_beta, w_res, w_out)
    assert out.shape == (B, D_OUT), out.shape
    assert out.dtype == x.dtype, out.dtype
    assert jnp.allclose(out, ref, atol=5e-3, rtol=5e-3), float(
        jnp.max(jnp.abs(out - ref))
    )

    print("KERNEL_OK")
</pallas_src>

<mosaic_0001>
module attributes {stable_mosaic.version = 11 : i64} {
  func.func @hebbnet_kernel(%arg0: i32, %arg1: memref<8x32xf32, #tpu.memory_space<vmem>>, %arg2: memref<32x300xf32, #tpu.memory_space<vmem>>, %arg3: memref<4x1x300xf32, #tpu.memory_space<vmem>>, %arg4: memref<4x1x300xf32, #tpu.memory_space<vmem>>, %arg5: memref<4x300x300xf32, #tpu.memory_space<vmem>>, %arg6: memref<300x10xf32, #tpu.memory_space<vmem>>, %arg7: memref<8x10xf32, #tpu.memory_space<vmem>>) attributes {dimension_semantics = [#tpu.dimension_semantics<parallel>], iteration_bounds = array<i64: 1>, scalar_prefetch = 0 : i64, scratch_operands = 0 : i64, tpu.core_type = #tpu.core_type<tc>, window_params = [{transform_indices = @transform_0, window_bounds = array<i64: 8, 32>}, {pipeline_mode = #tpu.pipeline_mode<synchronous>, transform_indices = @transform_1, window_bounds = array<i64: 32, 300>}, {pipeline_mode = #tpu.pipeline_mode<synchronous>, transform_indices = @transform_2, window_bounds = array<i64: 4, 1, 300>}, {pipeline_mode = #tpu.pipeline_mode<synchronous>, transform_indices = @transform_3, window_bounds = array<i64: 4, 1, 300>}, {pipeline_mode = #tpu.pipeline_mode<synchronous>, transform_indices = @transform_4, window_bounds = array<i64: 4, 300, 300>}, {pipeline_mode = #tpu.pipeline_mode<synchronous>, transform_indices = @transform_5, window_bounds = array<i64: 300, 10>}, {transform_indices = @transform_6, window_bounds = array<i64: 8, 10>}]} {
    %c0 = arith.constant 0 : index
    %c0_0 = arith.constant 0 : index
    %0 = vector.load %arg1[%c0, %c0_0] : memref<8x32xf32, #tpu.memory_space<vmem>>, vector<8x32xf32>
    %c0_1 = arith.constant 0 : index
    %c0_2 = arith.constant 0 : index
    %1 = vector.load %arg2[%c0_1, %c0_2] : memref<32x300xf32, #tpu.memory_space<vmem>>, vector<32x300xf32>
    %cst = arith.constant dense<0.000000e+00> : vector<8x300xf32>
    %2 = tpu.matmul %0, %1, %cst {dimension_numbers = #tpu.dot_dimension_numbers<[1], [0], [0], [1], [0, 0, 1, 1], [], []>} : vector<8x32xf32>, vector<32x300xf32>, vector<8x300xf32> -> vector<8x300xf32>
    %3 = math.tanh %2 : vector<8x300xf32>
    %cst_3 = arith.constant dense<0.000000e+00> : vector<8xf32>
    %4 = vector.multi_reduction <add>, %3, %cst_3 [1] : vector<8x300xf32> to vector<8xf32>
    %5 = vector.shape_cast %4 : vector<8xf32> to vector<8x1xf32>
    %cst_4 = arith.constant 3.000000e+02 : f32
    %6 = vector.broadcast %cst_4 : f32 to vector<8x1xf32>
    %7 = arith.divf %5, %6 : vector<8x1xf32>
    %8 = vector.broadcast %7 : vector<8x1xf32> to vector<8x300xf32>
    %9 = arith.subf %3, %8 : vector<8x300xf32>
    %10 = arith.mulf %9, %9 : vector<8x300xf32>
    %cst_5 = arith.constant dense<0.000000e+00> : vector<8xf32>
    %11 = vector.multi_reduction <add>, %10, %cst_5 [1] : vector<8x300xf32> to vector<8xf32>
    %12 = vector.shape_cast %11 : vector<8xf32> to vector<8x1xf32>
    %cst_6 = arith.constant 3.000000e+02 : f32
    %13 = vector.broadcast %cst_6 : f32 to vector<8x1xf32>
    %14 = arith.divf %12, %13 : vector<8x1xf32>
    %15 = vector.broadcast %7 : vector<8x1xf32> to vector<8x300xf32>
    %16 = arith.subf %3, %15 : vector<8x300xf32>
    %cst_7 = arith.constant 9.99999974E-6 : f32
    %17 = vector.broadcast %cst_7 : f32 to vector<8x1xf32>
    %18 = arith.addf %14, %17 : vector<8x1xf32>
    %19 = math.rsqrt %18 : vector<8x1xf32>
    %20 = vector.broadcast %19 : vector<8x1xf32> to vector<8x300xf32>
    %21 = arith.mulf %16, %20 : vector<8x300xf32>
    %c0_8 = arith.constant 0 : index
    %c0_9 = arith.constant 0 : index
    %c0_10 = arith.constant 0 : index
    %22 = vector.load %arg3[%c0_8, %c0_9, %c0_10] : memref<4x1x300xf32, #tpu.memory_space<vmem>>, vector<1x1x300xf32>
    %23 = vector.shape_cast %22 : vector<1x1x300xf32> to vector<1x300xf32>
    %24 = vector.broadcast %23 : vector<1x300xf32> to vector<8x300xf32>
    %25 = arith.mulf %21, %24 : vector<8x300xf32>
    %c0_11 = arith.constant 0 : index
    %c0_12 = arith.constant 0 : index
    %c0_13 = arith.constant 0 : index
    %26 = vector.load %arg4[%c0_11, %c0_12, %c0_13] : memref<4x1x300xf32, #tpu.memory_space<vmem>>, vector<1x1x300xf32>
    %27 = vector.shape_cast %26 : vector<1x1x300xf32> to vector<1x300xf32>
    %28 = vector.broadcast %27 : vector<1x300xf32> to vector<8x300xf32>
    %29 = arith.addf %25, %28 : vector<8x300xf32>
    %c0_14 = arith.constant 0 : index
    %c0_15 = arith.constant 0 : index
    %c0_16 = arith.constant 0 : index
    %30 = vector.load %arg5[%c0_14, %c0_15, %c0_16] : memref<4x300x300xf32, #tpu.memory_space<vmem>>, vector<1x300x300xf32>
    %31 = vector.shape_cast %30 : vector<1x300x300xf32> to vector<300x300xf32>
    %cst_17 = arith.constant dense<0.000000e+00> : vector<8x300xf32>
    %32 = tpu.matmul %29, %31, %cst_17 {dimension_numbers = #tpu.dot_dimension_numbers<[1], [0], [0], [1], [0, 0, 1, 1], [], []>} : vector<8x300xf32>, vector<300x300xf32>, vector<8x300xf32> -> vector<8x300xf32>
    %33 = arith.addf %32, %3 : vector<8x300xf32>
    %34 = math.tanh %33 : vector<8x300xf32>
    %cst_18 = arith.constant dense<0.000000e+00> : vector<8xf32>
    %35 = vector.multi_reduction <add>, %34, %cst_18 [1] : vector<8x300xf32> to vector<8xf32>
    %36 = vector.shape_cast %35 : vector<8xf32> to vector<8x1xf32>
    %cst_19 = arith.constant 3.000000e+02 : f32
    %37 = vector.broadcast %cst_19 : f32 to vector<8x1xf32>
    %38 = arith.divf %36, %37 : vector<8x1xf32>
    %39 = vector.broadcast %38 : vector<8x1xf32> to vector<8x300xf32>
    %40 = arith.subf %34, %39 : vector<8x300xf32>
    %41 = arith.mulf %40, %40 : vector<8x300xf32>
    %cst_20 = arith.constant dense<0.000000e+00> : vector<8xf32>
    %42 = vector.multi_reduction <add>, %41, %cst_20 [1] : vector<8x300xf32> to vector<8xf32>
    %43 = vector.shape_cast %42 : vector<8xf32> to vector<8x1xf32>
    %cst_21 = arith.constant 3.000000e+02 : f32
    %44 = vector.broadcast %cst_21 : f32 to vector<8x1xf32>
    %45 = arith.divf %43, %44 : vector<8x1xf32>
    %46 = vector.broadcast %38 : vector<8x1xf32> to vector<8x300xf32>
    %47 = arith.subf %34, %46 : vector<8x300xf32>
    %cst_22 = arith.constant 9.99999974E-6 : f32
    %48 = vector.broadcast %cst_22 : f32 to vector<8x1xf32>
    %49 = arith.addf %45, %48 : vector<8x1xf32>
    %50 = math.rsqrt %49 : vector<8x1xf32>
    %51 = vector.broadcast %50 : vector<8x1xf32> to vector<8x300xf32>
    %52 = arith.mulf %47, %51 : vector<8x300xf32>
    %c1 = arith.constant 1 : index
    %c0_23 = arith.constant 0 : index
    %c0_24 = arith.constant 0 : index
    %53 = vector.load %arg3[%c1, %c0_23, %c0_24] : memref<4x1x300xf32, #tpu.memory_space<vmem>>, vector<1x1x300xf32>
    %54 = vector.shape_cast %53 : vector<1x1x300xf32> to vector<1x300xf32>
    %55 = vector.broadcast %54 : vector<1x300xf32> to vector<8x300xf32>
    %56 = arith.mulf %52, %55 : vector<8x300xf32>
    %c1_25 = arith.constant 1 : index
    %c0_26 = arith.constant 0 : index
    %c0_27 = arith.constant 0 : index
    %57 = vector.load %arg4[%c1_25, %c0_26, %c0_27] : memref<4x1x300xf32, #tpu.memory_space<vmem>>, vector<1x1x300xf32>
    %58 = vector.shape_cast %57 : vector<1x1x300xf32> to vector<1x300xf32>
    %59 = vector.broadcast %58 : vector<1x300xf32> to vector<8x300xf32>
    %60 = arith.addf %56, %59 : vector<8x300xf32>
    %c1_28 = arith.constant 1 : index
    %c0_29 = arith.constant 0 : index
    %c0_30 = arith.constant 0 : index
    %61 = vector.load %arg5[%c1_28, %c0_29, %c0_30] : memref<4x300x300xf32, #tpu.memory_space<vmem>>, vector<1x300x300xf32>
    %62 = vector.shape_cast %61 : vector<1x300x300xf32> to vector<300x300xf32>
    %cst_31 = arith.constant dense<0.000000e+00> : vector<8x300xf32>
    %63 = tpu.matmul %60, %62, %cst_31 {dimension_numbers = #tpu.dot_dimension_numbers<[1], [0], [0], [1], [0, 0, 1, 1], [], []>} : vector<8x300xf32>, vector<300x300xf32>, vector<8x300xf32> -> vector<8x300xf32>
    %64 = arith.addf %63, %34 : vector<8x300xf32>
    %65 = math.tanh %64 : vector<8x300xf32>
    %cst_32 = arith.constant dense<0.000000e+00> : vector<8xf32>
    %66 = vector.multi_reduction <add>, %65, %cst_32 [1] : vector<8x300xf32> to vector<8xf32>
    %67 = vector.shape_cast %66 : vector<8xf32> to vector<8x1xf32>
    %cst_33 = arith.constant 3.000000e+02 : f32
    %68 = vector.broadcast %cst_33 : f32 to vector<8x1xf32>
    %69 = arith.divf %67, %68 : vector<8x1xf32>
    %70 = vector.broadcast %69 : vector<8x1xf32> to vector<8x300xf32>
    %71 = arith.subf %65, %70 : vector<8x300xf32>
    %72 = arith.mulf %71, %71 : vector<8x300xf32>
    %cst_34 = arith.constant dense<0.000000e+00> : vector<8xf32>
    %73 = vector.multi_reduction <add>, %72, %cst_34 [1] : vector<8x300xf32> to vector<8xf32>
    %74 = vector.shape_cast %73 : vector<8xf32> to vector<8x1xf32>
    %cst_35 = arith.constant 3.000000e+02 : f32
    %75 = vector.broadcast %cst_35 : f32 to vector<8x1xf32>
    %76 = arith.divf %74, %75 : vector<8x1xf32>
    %77 = vector.broadcast %69 : vector<8x1xf32> to vector<8x300xf32>
    %78 = arith.subf %65, %77 : vector<8x300xf32>
    %cst_36 = arith.constant 9.99999974E-6 : f32
    %79 = vector.broadcast %cst_36 : f32 to vector<8x1xf32>
    %80 = arith.addf %76, %79 : vector<8x1xf32>
    %81 = math.rsqrt %80 : vector<8x1xf32>
    %82 = vector.broadcast %81 : vector<8x1xf32> to vector<8x300xf32>
    %83 = arith.mulf %78, %82 : vector<8x300xf32>
    %c2 = arith.constant 2 : index
    %c0_37 = arith.constant 0 : index
    %c0_38 = arith.constant 0 : index
    %84 = vector.load %arg3[%c2, %c0_37, %c0_38] : memref<4x1x300xf32, #tpu.memory_space<vmem>>, vector<1x1x300xf32>
    %85 = vector.shape_cast %84 : vector<1x1x300xf32> to vector<1x300xf32>
    %86 = vector.broadcast %85 : vector<1x300xf32> to vector<8x300xf32>
    %87 = arith.mulf %83, %86 : vector<8x300xf32>
    %c2_39 = arith.constant 2 : index
    %c0_40 = arith.constant 0 : index
    %c0_41 = arith.constant 0 : index
    %88 = vector.load %arg4[%c2_39, %c0_40, %c0_41] : memref<4x1x300xf32, #tpu.memory_space<vmem>>, vector<1x1x300xf32>
    %89 = vector.shape_cast %88 : vector<1x1x300xf32> to vector<1x300xf32>
    %90 = vector.broadcast %89 : vector<1x300xf32> to vector<8x300xf32>
    %91 = arith.addf %87, %90 : vector<8x300xf32>
    %c2_42 = arith.constant 2 : index
    %c0_43 = arith.constant 0 : index
    %c0_44 = arith.constant 0 : index
    %92 = vector.load %arg5[%c2_42, %c0_43, %c0_44] : memref<4x300x300xf32, #tpu.memory_space<vmem>>, vector<1x300x300xf32>
    %93 = vector.shape_cast %92 : vector<1x300x300xf32> to vector<300x300xf32>
    %cst_45 = arith.constant dense<0.000000e+00> : vector<8x300xf32>
    %94 = tpu.matmul %91, %93, %cst_45 {dimension_numbers = #tpu.dot_dimension_numbers<[1], [0], [0], [1], [0, 0, 1, 1], [], []>} : vector<8x300xf32>, vector<300x300xf32>, vector<8x300xf32> -> vector<8x300xf32>
    %95 = arith.addf %94, %65 : vector<8x300xf32>
    %96 = math.tanh %95 : vector<8x300xf32>
    %cst_46 = arith.constant dense<0.000000e+00> : vector<8xf32>
    %97 = vector.multi_reduction <add>, %96, %cst_46 [1] : vector<8x300xf32> to vector<8xf32>
    %98 = vector.shape_cast %97 : vector<8xf32> to vector<8x1xf32>
    %cst_47 = arith.constant 3.000000e+02 : f32
    %99 = vector.broadcast %cst_47 : f32 to vector<8x1xf32>
    %100 = arith.divf %98, %99 : vector<8x1xf32>
    %101 = vector.broadcast %100 : vector<8x1xf32> to vector<8x300xf32>
    %102 = arith.subf %96, %101 : vector<8x300xf32>
    %103 = arith.mulf %102, %102 : vector<8x300xf32>
    %cst_48 = arith.constant dense<0.000000e+00> : vector<8xf32>
    %104 = vector.multi_reduction <add>, %103, %cst_48 [1] : vector<8x300xf32> to vector<8xf32>
    %105 = vector.shape_cast %104 : vector<8xf32> to vector<8x1xf32>
    %cst_49 = arith.constant 3.000000e+02 : f32
    %106 = vector.broadcast %cst_49 : f32 to vector<8x1xf32>
    %107 = arith.divf %105, %106 : vector<8x1xf32>
    %108 = vector.broadcast %100 : vector<8x1xf32> to vector<8x300xf32>
    %109 = arith.subf %96, %108 : vector<8x300xf32>
    %cst_50 = arith.constant 9.99999974E-6 : f32
    %110 = vector.broadcast %cst_50 : f32 to vector<8x1xf32>
    %111 = arith.addf %107, %110 : vector<8x1xf32>
    %112 = math.rsqrt %111 : vector<8x1xf32>
    %113 = vector.broadcast %112 : vector<8x1xf32> to vector<8x300xf32>
    %114 = arith.mulf %109, %113 : vector<8x300xf32>
    %c3 = arith.constant 3 : index
    %c0_51 = arith.constant 0 : index
    %c0_52 = arith.constant 0 : index
    %115 = vector.load %arg3[%c3, %c0_51, %c0_52] : memref<4x1x300xf32, #tpu.memory_space<vmem>>, vector<1x1x300xf32>
    %116 = vector.shape_cast %115 : vector<1x1x300xf32> to vector<1x300xf32>
    %117 = vector.broadcast %116 : vector<1x300xf32> to vector<8x300xf32>
    %118 = arith.mulf %114, %117 : vector<8x300xf32>
    %c3_53 = arith.constant 3 : index
    %c0_54 = arith.constant 0 : index
    %c0_55 = arith.constant 0 : index
    %119 = vector.load %arg4[%c3_53, %c0_54, %c0_55] : memref<4x1x300xf32, #tpu.memory_space<vmem>>, vector<1x1x300xf32>
    %120 = vector.shape_cast %119 : vector<1x1x300xf32> to vector<1x300xf32>
    %121 = vector.broadcast %120 : vector<1x300xf32> to vector<8x300xf32>
    %122 = arith.addf %118, %121 : vector<8x300xf32>
    %c3_56 = arith.constant 3 : index
    %c0_57 = arith.constant 0 : index
    %c0_58 = arith.constant 0 : index
    %123 = vector.load %arg5[%c3_56, %c0_57, %c0_58] : memref<4x300x300xf32, #tpu.memory_space<vmem>>, vector<1x300x300xf32>
    %124 = vector.shape_cast %123 : vector<1x300x300xf32> to vector<300x300xf32>
    %cst_59 = arith.constant dense<0.000000e+00> : vector<8x300xf32>
    %125 = tpu.matmul %122, %124, %cst_59 {dimension_numbers = #tpu.dot_dimension_numbers<[1], [0], [0], [1], [0, 0, 1, 1], [], []>} : vector<8x300xf32>, vector<300x300xf32>, vector<8x300xf32> -> vector<8x300xf32>
    %126 = arith.addf %125, %96 : vector<8x300xf32>
    %127 = math.tanh %126 : vector<8x300xf32>
    %c0_60 = arith.constant 0 : index
    %c0_61 = arith.constant 0 : index
    %128 = vector.load %arg6[%c0_60, %c0_61] : memref<300x10xf32, #tpu.memory_space<vmem>>, vector<300x10xf32>
    %cst_62 = arith.constant dense<0.000000e+00> : vector<8x10xf32>
    %129 = tpu.matmul %127, %128, %cst_62 {dimension_numbers = #tpu.dot_dimension_numbers<[1], [0], [0], [1], [0, 0, 1, 1], [], []>} : vector<8x300xf32>, vector<300x10xf32>, vector<8x10xf32> -> vector<8x10xf32>
    %c0_63 = arith.constant 0 : index
    %c0_64 = arith.constant 0 : index
    %130 = vector.load %arg7[%c0_63, %c0_64] : memref<8x10xf32, #tpu.memory_space<vmem>>, vector<8x10xf32>
    tpu.vector_store %arg7[%c0_63, %c0_64], %129 {strides = array<i32>} : memref<8x10xf32, #tpu.memory_space<vmem>>, vector<8x10xf32>,
    return
  }
  func.func @transform_0(%arg0: i32) -> (i32, i32) {
    %c0_i32 = arith.constant 0 : i32
    %c0_i32_0 = arith.constant 0 : i32
    return %arg0, %c0_i32 : i32, i32
  }
  func.func @transform_1(%arg0: i32) -> (i32, i32) {
    %c0_i32 = arith.constant 0 : i32
    %c0_i32_0 = arith.constant 0 : i32
    %c0_i32_1 = arith.constant 0 : i32
    return %c0_i32, %c0_i32_0 : i32, i32
  }
  func.func @transform_2(%arg0: i32) -> (i32, i32, i32) {
    %c0_i32 = arith.constant 0 : i32
    %c0_i32_0 = arith.constant 0 : i32
    %c0_i32_1 = arith.constant 0 : i32
    %c0_i32_2 = arith.constant 0 : i32
    return %c0_i32, %c0_i32_0, %c0_i32_1 : i32, i32, i32
  }
  func.func @transform_3(%arg0: i32) -> (i32, i32, i32) {
    %c0_i32 = arith.constant 0 : i32
    %c0_i32_0 = arith.constant 0 : i32
    %c0_i32_1 = arith.constant 0 : i32
    %c0_i32_2 = arith.constant 0 : i32
    return %c0_i32, %c0_i32_0, %c0_i32_1 : i32, i32, i32
  }
  func.func @transform_4(%arg0: i32) -> (i32, i32, i32) {
    %c0_i32 = arith.constant 0 : i32
    %c0_i32_0 = arith.constant 0 : i32
    %c0_i32_1 = arith.constant 0 : i32
    %c0_i32_2 = arith.constant 0 : i32
    return %c0_i32, %c0_i32_0, %c0_i32_1 : i32, i32, i32
  }
  func.func @transform_5(%arg0: i32) -> (i32, i32) {
    %c0_i32 = arith.constant 0 : i32
    %c0_i32_0 = arith.constant 0 : i32
    %c0_i32_1 = arith.constant 0 : i32
    return %c0_i32, %c0_i32_0 : i32, i32
  }
  func.func @transform_6(%arg0: i32) -> (i32, i32) {
    %c0_i32 = arith.constant 0 : i32
    %c0_i32_0 = arith.constant 0 : i32
    return %arg0, %c0_i32 : i32, i32
  }
}

</mosaic_0001>

<llo_original>
// kernel: tpu_custom_call.1
$region0: #{tpu_custom_call.1}
  #allocation0 [shape = 'u32[]', space=smem, size = 0x4, offset = 0x4, fixed_abs, tag = 'smem constant byte address 0x4 - core index']
  #allocation1 [shape = 'u32[144,128]{1,0:T(1,128)}', space=vmem, size = 0x12000, scoped, tag = 'internal scratch']
  %s0 = inlined_call_operand.vmem [shape: f32[8,32], index: 0, kind: input, shape index: {}]
  %s1 = inlined_call_operand.vmem [shape: f32[32,300], index: 1, kind: input, shape index: {}]
  %s2 = inlined_call_operand.vmem [shape: f32[4,1,300], index: 2, kind: input, shape index: {}]
  %s3 = inlined_call_operand.vmem [shape: f32[4,1,300], index: 3, kind: input, shape index: {}]
  %s4 = inlined_call_operand.vmem [shape: f32[4,300,300], index: 4, kind: input, shape index: {}]
  %s5 = inlined_call_operand.vmem [shape: f32[300,10], index: 5, kind: input, shape index: {}]
  %s6 = inlined_call_operand.hbm [shape: f32[8,10], index: 6, kind: output, shape index: {}]
  %s7 = sld [smem:[#allocation0]]
  $region34: #{tpu_custom_call.1} parent=0
    _
  %s9 = ssub.s32 1, %s7
  %s10 = scalar_select 0, %s9, %s7
  $region1: #{tpu_custom_call.1} parent=0
    #allocation2 [shape = 'u8[4096]{0}', space=vmem, size = 0x1000, scoped, tag = 'output window, operand 0, single buffered']
    #allocation3 [shape = 's32[1]{0}', space=sflag, size = 0x4, scoped, tag = 'scoped memory for tpu_custom_call.1']
    %11 = vsyncpa [#allocation3], 0
    // Predicated region
    $region2: #{tpu_custom_call.1} parent=1 // pred_check
      _
    $region3: #{tpu_custom_call.1} parent=1 // pred_check_branch
      %13 = sbr.rel (0) target = $region5
    $region4: #{tpu_custom_call.1} parent=1 // pred_region
      _
    $region5: #{tpu_custom_call.1} parent=1 // pred_fallthru
      _
    // Predicated region
    $region6: #{tpu_custom_call.1} parent=1 // pred_check
      _
    $region7: #{tpu_custom_call.1} parent=1 // pred_check_branch
      %15 = sbr.rel (0) target = $region9
    $region8: #{tpu_custom_call.1} parent=1 // pred_region
      _
    $region9: #{tpu_custom_call.1} parent=1 // pred_fallthru
      _
    // Predicated region
    $region10: #{tpu_custom_call.1} parent=1 // pred_check
      _
    $region11: #{tpu_custom_call.1} parent=1 // pred_check_branch
      %17 = sbr.rel (0) target = $region13
    $region12: #{tpu_custom_call.1} parent=1 // pred_region
      _
    $region13: #{tpu_custom_call.1} parent=1 // pred_fallthru
      _
    // Predicated region
    $region14: #{tpu_custom_call.1} parent=1 // pred_check
      _
    $region15: #{tpu_custom_call.1} parent=1 // pred_check_branch
      %19 = sbr.rel (0) target = $region17
    $region16: #{tpu_custom_call.1} parent=1 // pred_region
      _
    $region17: #{tpu_custom_call.1} parent=1 // pred_fallthru
      _
    // Predicated region
    $region18: #{tpu_custom_call.1} parent=1 // pred_check
      _
    $region19: #{tpu_custom_call.1} parent=1 // pred_check_branch
      %21 = sbr.rel (0) target = $region21
    $region20: #{tpu_custom_call.1} parent=1 // pred_region
      _
    $region21: #{tpu_custom_call.1} parent=1 // pred_fallthru
      _
    // Predicated region
    $region22: #{tpu_custom_call.1} parent=1 // pred_check
      _
    $region23: #{tpu_custom_call.1} parent=1 // pred_check_branch
      %23 = sbr.rel (0) target = $region25
    $region24: #{tpu_custom_call.1} parent=1 // pred_region
      _
    $region25: #{tpu_custom_call.1} parent=1 // pred_fallthru
      _
    %v24 = vld [vmem:[%s0] sm:$0xff]
    %v25 = vld [vmem:[%s1] sm:$0xff]
    %v26 = vld [vmem:[%s1 + $0x8] sm:$0xff]
    %v27 = vld [vmem:[%s1 + $0x10] sm:$0xff]
    %v28 = vld [vmem:[%s1 + $0x18] sm:$0xff]
    %v29 = vld [vmem:[%s1 + $0x20] sm:$0xff]
    %v30 = vld [vmem:[%s1 + $0x28] sm:$0xff]
    %v31 = vld [vmem:[%s1 + $0x30] sm:$0xff]
    %v32 = vld [vmem:[%s1 + $0x38] sm:$0xff]
    %v33 = vld [vmem:[%s1 + $0x40] sm:$0xff]
    %v34 = vld [vmem:[%s1 + $0x48] sm:$0xff]
    %v35 = vld [vmem:[%s1 + $0x50] sm:$0xff]
    %v36 = vld [vmem:[%s1 + $0x58] sm:$0xff]
    %vm37 = vcmask 261120
    %v39 = vsel %vm37, %v24, 0
    %41 = vmatprep.subr.mxu0 %v26
    %42 = vmatpush1.msra.mxu0 %v25
    %43 = vmatprep.subr.mxu0 %v29
    %44 = vmatpush1.msra.mxu0 %v28
    %45 = vmatprep.subr.mxu0 %v32
    %46 = vmatpush1.msra.mxu0 %v31
    %47 = vmatprep.subr.mxu0 %v35
    %48 = vmatpush1.msra.mxu0 %v34
    %49 = vmatprep.subr.mxu0 0.0
    %50 = vmatpush1.msra.mxu0 0.0
    %51 = vmatprep.subr.mxu0 0.0
    %52 = vmatpush1.msra.mxu0 0.0
    %53 = vmatprep.subr.mxu0 0.0
    %54 = vmatpush1.msra.mxu0 0.0
    %55 = vmatprep.subr.mxu0 0.0
    %56 = vmatpush1.msra.mxu0 0.0
    %57 = vmatprep.subr.mxu0 0.0
    %58 = vmatpush1.msra.mxu0 0.0
    %59 = vmatprep.subr.mxu0 0.0
    %60 = vmatpush1.msra.mxu0 0.0
    %61 = vmatprep.subr.mxu0 0.0
    %62 = vmatpush1.msra.mxu0 0.0
    %63 = vmatprep.subr.mxu0 0.0
    %64 = vmatpush1.msra.mxu0 0.0
    %65 = vmatprep.subr.mxu0 0.0
    %66 = vmatpush1.msra.mxu0 0.0
    %67 = vmatprep.subr.mxu0 0.0
    %68 = vmatpush1.msra.mxu0 0.0
    %69 = vmatprep.subr.mxu0 0.0
    %70 = vmatpush1.msra.mxu0 0.0
    %71 = vmatprep.subr.mxu0 0.0
    %72 = vmatpush1.msra.mxu0 0.0
    %73 = vmatprep.subr.mxu0 0.0
    %74 = vmatpush1.msra.mxu0 0.0
    %75 = vmatprep.subr.mxu0 0.0
    %76 = vmatpush1.msra.mxu0 0.0
    %77 = vmatprep.subr.mxu0 0.0
    %78 = vmatpush1.msra.mxu0 0.0
    %79 = vmatprep.subr.mxu0 0.0
    %80 = vmatpush1.msra.mxu0 0.0
    %81 = vmatprep.subr.mxu0 0.0
    %82 = vmatpush1.msra.mxu0 0.0
    %83 = vmatprep.subr.mxu0 0.0
    %84 = vmatpush1.msra.mxu0 0.0
    %85 = vmatprep.subr.mxu0 0.0
    %86 = vmatpush1.msra.mxu0 0.0
    %87 = vmatprep.subr.mxu0 0.0
    %88 = vmatpush1.msra.mxu0 0.0
    %89 = vmatprep.subr.mxu0 0.0
    %90 = vmatpush1.msra.mxu0 0.0
    %91 = vmatprep.subr.mxu0 0.0
    %92 = vmatpush1.msra.mxu0 0.0
    %93 = vmatprep.subr.mxu0 0.0
    %94 = vmatpush1.msra.mxu0 0.0
    %95 = vmatprep.subr.mxu0 0.0
    %96 = vmatpush1.msra.mxu0 0.0
    %97 = vmatprep.subr.mxu0 0.0
    %98 = vmatpush1.msra.mxu0 0.0
    %99 = vmatprep.subr.mxu0 0.0
    %100 = vmatpush1.msra.mxu0 0.0
    %101 = vmatprep.subr.mxu0 0.0
    %102 = vmatpush1.msra.mxu0 0.0
    %103 = vmatprep.subr.mxu0 0.0
    %104 = vmatpush1.msra.mxu0 0.0
    %105 = vmatprep.mubr.f32.mxu0 0.0
    %106 = vmatmul.mubr.f32.gmra.mrb[0].mxu0 %v39
    %v107 = vpop.f32.mrb[0].mxu0
    %v108 = vadd.f32 0.0, %v107
    %v109 = vpop.f32.mrb[0].mxu0
    %v110 = vadd.f32 0.0, %v109
    %111 = vdwg.mxu0
    %112 = vmatprep.subr.mxu0 0.0
    %113 = vmatpush1.msra.mxu0 %v27
    %114 = vmatprep.subr.mxu0 0.0
    %115 = vmatpush1.msra.mxu0 %v30
    %116 = vmatprep.subr.mxu0 0.0
    %117 = vmatpush1.msra.mxu0 %v33
    %118 = vmatprep.subr.mxu0 0.0
    %119 = vmatpush1.msra.mxu0 %v36
    %120 = vmatprep.subr.mxu0 0.0
    %121 = vmatpush1.msra.mxu0 0.0
    %122 = vmatprep.subr.mxu0 0.0
    %123 = vmatpush1.msra.mxu0 0.0
    %124 = vmatprep.subr.mxu0 0.0
    %125 = vmatpush1.msra.mxu0 0.0
    %126 = vmatprep.subr.mxu0 0.0
    %127 = vmatpush1.msra.mxu0 0.0
    %128 = vmatprep.subr.mxu0 0.0
    %129 = vmatpush1.msra.mxu0 0.0
    %130 = vmatprep.subr.mxu0 0.0
    %131 = vmatpush1.msra.mxu0 0.0
    %132 = vmatprep.subr.mxu0 0.0
    %133 = vmatpush1.msra.mxu0 0.0
    %134 = vmatprep.subr.mxu0 0.0
    %135 = vmatpush1.msra.mxu0 0.0
    %136 = vmatprep.subr.mxu0 0.0
    %137 = vmatpush1.msra.mxu0 0.0
    %138 = vmatprep.subr.mxu0 0.0
    %139 = vmatpush1.msra.mxu0 0.0
    %140 = vmatprep.subr.mxu0 0.0
    %141 = vmatpush1.msra.mxu0 0.0
    %142 = vmatprep.subr.mxu0 0.0
    %143 = vmatpush1.msra.mxu0 0.0
    %144 = vmatprep.subr.mxu0 0.0
    %145 = vmatpush1.msra.mxu0 0.0
    %146 = vmatprep.subr.mxu0 0.0
    %147 = vmatpush1.msra.mxu0 0.0
    %148 = vmatprep.subr.mxu0 0.0
    %149 = vmatpush1.msra.mxu0 0.0
    %150 = vmatprep.subr.mxu0 0.0
    %151 = vmatpush1.msra.mxu0 0.0
    %152 = vmatprep.subr.mxu0 0.0
    %153 = vmatpush1.msra.mxu0 0.0
    %154 = vmatprep.subr.mxu0 0.0
    %155 = vmatpush1.msra.mxu0 0.0
    %156 = vmatprep.subr.mxu0 0.0
    %157 = vmatpush1.msra.mxu0 0.0
    %158 = vmatprep.subr.mxu0 0.0
    %159 = vmatpush1.msra.mxu0 0.0
    %160 = vmatprep.subr.mxu0 0.0
    %161 = vmatpush1.msra.mxu0 0.0
    %162 = vmatprep.subr.mxu0 0.0
    %163 = vmatpush1.msra.mxu0 0.0
    %164 = vmatprep.subr.mxu0 0.0
    %165 = vmatpush1.msra.mxu0 0.0
    %166 = vmatprep.subr.mxu0 0.0
    %167 = vmatpush1.msra.mxu0 0.0
    %168 = vmatprep.subr.mxu0 0.0
    %169 = vmatpush1.msra.mxu0 0.0
    %170 = vmatprep.subr.mxu0 0.0
    %171 = vmatpush1.msra.mxu0 0.0
    %172 = vmatprep.subr.mxu0 0.0
    %173 = vmatpush1.msra.mxu0 0.0
    %174 = vmatprep.subr.mxu0 0.0
    %175 = vmatpush1.msra.mxu0 0.0
    %176 = vmatprep.mubr.f32.mxu0 0.0
    %177 = vmatmul.mubr.f32.gmra.mrb[0].mxu0 %v39
    %v178 = vpop.f32.mrb[0].mxu0
    %v179 = vadd.f32 0.0, %v178
    %v180 = vpop.f32.mrb[0].mxu0
    %181 = vdwg.mxu0
    %v182 = vtanh.pop %v108
    %v183 = vtanh.pop %v110
    %v184 = vtanh.pop %v179
    %v185 = vadd.f32 %v182, %v183
    %vm186 = vcmask 359424
    %v187 = vsel %vm186, %v184, 0.0
    %v188 = vadd.f32 %v185, %v187
    %189 = vadd.xlane.f32.xlu0 %v188
    %v190 = vpop.xlane.xlu0 %189
    %v191 = vrcp.pop 300.0
    %v192 = vmul.f32 %v190, %v191
    %v193 = vsub.f32 %v182, %v192
    %v194 = vsub.f32 %v183, %v192
    %v195 = vsub.f32 %v184, %v192
    %v196 = vmul.f32 %v193, %v193
    %v197 = vmul.f32 %v194, %v194
    %v198 = vmul.f32 %v195, %v195
    %v199 = vadd.f32 %v196, %v197
    %v200 = vsel %vm186, %v198, 0.0
    %v201 = vadd.f32 %v199, %v200
    %202 = vadd.xlane.f32.xlu0 %v201
    %v203 = vpop.xlane.xlu0 %202
    %v204 = vmul.f32 %v203, %v191
    %v205 = vadd.f32 %v204, 1e-05
    %v206 = vrsqrt.pop %v205
    %v207 = vmul.f32 %v193, %v206
    %v208 = vmul.f32 %v194, %v206
    %v209 = vmul.f32 %v195, %v206
    %v210 = vld [vmem:[%s2] sm:$0x7]
    %v212 = vlaneseq
    %v213 = vshrl.u32 %v212, 7
    %v214 = vsub.s32 0, %v213
    %v215 = vrot.slane %v210, %v214
    %v216 = vlaneseq
    %v217 = vshrl.u32 %v216, 7
    %v218 = vsub.s32 1, %v217
    %v219 = vrot.slane %v210, %v218
    %v220 = vlaneseq
    %v221 = vshrl.u32 %v220, 7
    %v222 = vsub.s32 2, %v221
    %v223 = vrot.slane %v210, %v222
    %v227 = vmul.f32 %v207, %v215
    %v228 = vmul.f32 %v208, %v219
    %v229 = vmul.f32 %v209, %v223
    %v230 = vld [vmem:[%s3] sm:$0x7]
    %v232 = vlaneseq
    %v233 = vshrl.u32 %v232, 7
    %v234 = vsub.s32 0, %v233
    %v235 = vrot.slane %v230, %v234
    %v236 = vlaneseq
    %v237 = vshrl.u32 %v236, 7
    %v238 = vsub.s32 1, %v237
    %v239 = vrot.slane %v230, %v238
    %v240 = vlaneseq
    %v241 = vshrl.u32 %v240, 7
    %v242 = vsub.s32 2, %v241
    %v243 = vrot.slane %v230, %v242
    %v247 = vadd.f32 %v227, %v235
    %v248 = vadd.f32 %v228, %v239
    %v249 = vadd.f32 %v229, %v243
    %v250 = vld [vmem:[%s4] sm:$0xff]
    %v251 = vld [vmem:[%s4 + $0x8] sm:$0xff]
    %v252 = vld [vmem:[%s4 + $0x10] sm:$0xff]
    %v253 = vld [vmem:[%s4 + $0x18] sm:$0xff]
    %v254 = vld [vmem:[%s4 + $0x20] sm:$0xff]
    %v255 = vld [vmem:[%s4 + $0x28] sm:$0xff]
    %v256 = vld [vmem:[%s4 + $0x30] sm:$0xff]
    %v257 = vld [vmem:[%s4 + $0x38] sm:$0xff]
    %v258 = vld [vmem:[%s4 + $0x40] sm:$0xff]
    %v259 = vld [vmem:[%s4 + $0x48] sm:$0xff]
    %v260 = vld [vmem:[%s4 + $0x50] sm:$0xff]
    %v261 = vld [vmem:[%s4 + $0x58] sm:$0xff]
    %v262 = vld [vmem:[%s4 + $0x60] sm:$0xff]
    %v263 = vld [vmem:[%s4 + $0x68] sm:$0xff]
    %v264 = vld [vmem:[%s4 + $0x70] sm:$0xff]
    %v265 = vld [vmem:[%s4 + $0x78] sm:$0xff]
    %v266 = vld [vmem:[%s4 + $0x80] sm:$0xff]
    %v267 = vld [vmem:[%s4 + $0x88] sm:$0xff]
    %v268 = vld [vmem:[%s4 + $0x90] sm:$0xff]
    %v269 = vld [vmem:[%s4 + $0x98] sm:$0xff]
    %v270 = vld [vmem:[%s4 + $0xa0] sm:$0xff]
    %v271 = vld [vmem:[%s4 + $0xa8] sm:$0xff]
    %v272 = vld [vmem:[%s4 + $0xb0] sm:$0xff]
    %v273 = vld [vmem:[%s4 + $0xb8] sm:$0xff]
    %v274 = vld [vmem:[%s4 + $0xc0] sm:$0xff]
    %v275 = vld [vmem:[%s4 + $0xc8] sm:$0xff]
    %v276 = vld [vmem:[%s4 + $0xd0] sm:$0xff]
    %v277 = vld [vmem:[%s4 + $0xd8] sm:$0xff]
    %v278 = vld [vmem:[%s4 + $0xe0] sm:$0xff]
    %v279 = vld [vmem:[%s4 + $0xe8] sm:$0xff]
    %v280 = vld [vmem:[%s4 + $0xf0] sm:$0xff]
    %v281 = vld [vmem:[%s4 + $0xf8] sm:$0xff]
    %v282 = vld [vmem:[%s4 + $0x100] sm:$0xff]
    %v283 = vld [vmem:[%s4 + $0x108] sm:$0xff]
    %v284 = vld [vmem:[%s4 + $0x110] sm:$0xff]
    %v285 = vld [vmem:[%s4 + $0x118] sm:$0xff]
    %v286 = vld [vmem:[%s4 + $0x120] sm:$0xff]
    %v287 = vld [vmem:[%s4 + $0x128] sm:$0xff]
    %v288 = vld [vmem:[%s4 + $0x130] sm:$0xff]
    %v289 = vld [vmem:[%s4 + $0x138] sm:$0xff]
    %v290 = vld [vmem:[%s4 + $0x140] sm:$0xff]
    %v291 = vld [vmem:[%s4 + $0x148] sm:$0xff]
    %v292 = vld [vmem:[%s4 + $0x150] sm:$0xff]
    %v293 = vld [vmem:[%s4 + $0x158] sm:$0xff]
    %v294 = vld [vmem:[%s4 + $0x160] sm:$0xff]
    %v295 = vld [vmem:[%s4 + $0x168] sm:$0xff]
    %v296 = vld [vmem:[%s4 + $0x170] sm:$0xff]
    %v297 = vld [vmem:[%s4 + $0x178] sm:$0xff]
    %v298 = vld [vmem:[%s4 + $0x180] sm:$0xff]
    %v299 = vld [vmem:[%s4 + $0x188] sm:$0xff]
    %v300 = vld [vmem:[%s4 + $0x190] sm:$0xff]
    %v301 = vld [vmem:[%s4 + $0x198] sm:$0xff]
    %v302 = vld [vmem:[%s4 + $0x1a0] sm:$0xff]
    %v303 = vld [vmem:[%s4 + $0x1a8] sm:$0xff]
    %v304 = vld [vmem:[%s4 + $0x1b0] sm:$0xff]
    %v305 = vld [vmem:[%s4 + $0x1b8] sm:$0xff]
    %v306 = vld [vmem:[%s4 + $0x1c0] sm:$0xff]
    %v307 = vld [vmem:[%s4 + $0x1c8] sm:$0xff]
    %v308 = vld [vmem:[%s4 + $0x1d0] sm:$0xff]
    %v309 = vld [vmem:[%s4 + $0x1d8] sm:$0xff]
    %v310 = vld [vmem:[%s4 + $0x1e0] sm:$0xff]
    %v311 = vld [vmem:[%s4 + $0x1e8] sm:$0xff]
    %v312 = vld [vmem:[%s4 + $0x1f0] sm:$0xff]
    %v313 = vld [vmem:[%s4 + $0x1f8] sm:$0xff]
    %v314 = vld [vmem:[%s4 + $0x200] sm:$0xff]
    %v315 = vld [vmem:[%s4 + $0x208] sm:$0xff]
    %v316 = vld [vmem:[%s4 + $0x210] sm:$0xff]
    %v317 = vld [vmem:[%s4 + $0x218] sm:$0xff]
    %v318 = vld [vmem:[%s4 + $0x220] sm:$0xff]
    %v319 = vld [vmem:[%s4 + $0x228] sm:$0xff]
    %v320 = vld [vmem:[%s4 + $0x230] sm:$0xff]
    %v321 = vld [vmem:[%s4 + $0x238] sm:$0xff]
    %v322 = vld [vmem:[%s4 + $0x240] sm:$0xff]
    %v323 = vld [vmem:[%s4 + $0x248] sm:$0xff]
    %v324 = vld [vmem:[%s4 + $0x250] sm:$0xff]
    %v325 = vld [vmem:[%s4 + $0x258] sm:$0xff]
    %v326 = vld [vmem:[%s4 + $0x260] sm:$0xff]
    %v327 = vld [vmem:[%s4 + $0x268] sm:$0xff]
    %v328 = vld [vmem:[%s4 + $0x270] sm:$0xff]
    %v329 = vld [vmem:[%s4 + $0x278] sm:$0xff]
    %v330 = vld [vmem:[%s4 + $0x280] sm:$0xff]
    %v331 = vld [vmem:[%s4 + $0x288] sm:$0xff]
    %v332 = vld [vmem:[%s4 + $0x290] sm:$0xff]
    %v333 = vld [vmem:[%s4 + $0x298] sm:$0xff]
    %v334 = vld [vmem:[%s4 + $0x2a0] sm:$0xff]
    %v335 = vld [vmem:[%s4 + $0x2a8] sm:$0xff]
    %v336 = vld [vmem:[%s4 + $0x2b0] sm:$0xff]
    %v337 = vld [vmem:[%s4 + $0x2b8] sm:$0xff]
    %v338 = vld [vmem:[%s4 + $0x2c0] sm:$0xff]
    %v339 = vld [vmem:[%s4 + $0x2c8] sm:$0xff]
    %v340 = vld [vmem:[%s4 + $0x2d0] sm:$0xff]
    %v341 = vld [vmem:[%s4 + $0x2d8] sm:$0xff]
    %v342 = vld [vmem:[%s4 + $0x2e0] sm:$0xff]
    %v343 = vld [vmem:[%s4 + $0x2e8] sm:$0xff]
    %v344 = vld [vmem:[%s4 + $0x2f0] sm:$0xff]
    %v345 = vld [vmem:[%s4 + $0x2f8] sm:$0xff]
    %v346 = vld [vmem:[%s4 + $0x300] sm:$0xff]
    %v347 = vld [vmem:[%s4 + $0x308] sm:$0xff]
    %v348 = vld [vmem:[%s4 + $0x310] sm:$0xff]
    %v349 = vld [vmem:[%s4 + $0x318] sm:$0xff]
    %v350 = vld [vmem:[%s4 + $0x320] sm:$0xff]
    %v351 = vld [vmem:[%s4 + $0x328] sm:$0xff]
    %v352 = vld [vmem:[%s4 + $0x330] sm:$0xff]
    %v353 = vld [vmem:[%s4 + $0x338] sm:$0xff]
    %v354 = vld [vmem:[%s4 + $0x340] sm:$0xff]
    %v355 = vld [vmem:[%s4 + $0x348] sm:$0xff]
    %v356 = vld [vmem:[%s4 + $0x350] sm:$0xff]
    %v357 = vld [vmem:[%s4 + $0x358] sm:$0xff]
    %v358 = vld [vmem:[%s4 + $0x360] sm:$0xff]
    %v359 = vld [vmem:[%s4 + $0x368] sm:$0xff]
    %v360 = vld [vmem:[%s4 + $0x370] sm:$0xff]
    %v361 = vld [vmem:[%s4 + $0x378] sm:$0xf]
    %v362 = vld [vmem:[%s4 + $0x380] sm:$0xf]
    %v363 = vld [vmem:[%s4 + $0x388] sm:$0xf]
    %v365 = vsel %vm186, %v249, 0
    %vm367 = vcmask 1043456
    %v369 = vsel %vm367, %v361, 0
    %v372 = vsel %vm367, %v362, 0
    %v375 = vsel %vm367, %v363, 0
    %377 = vmatprep.subr.mxu0 %v251
    %378 = vmatpush1.msra.mxu0 %v250
    %379 = vmatprep.subr.mxu0 %v254
    %380 = vmatpush1.msra.mxu0 %v253
    %381 = vmatprep.subr.mxu0 %v257
    %382 = vmatpush1.msra.mxu0 %v256
    %383 = vmatprep.subr.mxu0 %v260
    %384 = vmatpush1.msra.mxu0 %v259
    %385 = vmatprep.subr.mxu0 %v263
    %386 = vmatpush1.msra.mxu0 %v262
    %387 = vmatprep.subr.mxu0 %v266
    %388 = vmatpush1.msra.mxu0 %v265
    %389 = vmatprep.subr.mxu0 %v269
    %390 = vmatpush1.msra.mxu0 %v268
    %391 = vmatprep.subr.mxu0 %v272
    %392 = vmatpush1.msra.mxu0 %v271
    %393 = vmatprep.subr.mxu0 %v275
    %394 = vmatpush1.msra.mxu0 %v274
    %395 = vmatprep.subr.mxu0 %v278
    %396 = vmatpush1.msra.mxu0 %v277
    %397 = vmatprep.subr.mxu0 %v281
    %398 = vmatpush1.msra.mxu0 %v280
    %399 = vmatprep.subr.mxu0 %v284
    %400 = vmatpush1.msra.mxu0 %v283
    %401 = vmatprep.subr.mxu0 %v287
    %402 = vmatpush1.msra.mxu0 %v286
    %403 = vmatprep.subr.mxu0 %v290
    %404 = vmatpush1.msra.mxu0 %v289
    %405 = vmatprep.subr.mxu0 %v293
    %406 = vmatpush1.msra.mxu0 %v292
    %407 = vmatprep.subr.mxu0 %v296
    %408 = vmatpush1.msra.mxu0 %v295
    %409 = vmatprep.subr.mxu0 %v299
    %410 = vmatpush1.msra.mxu0 %v298
    %411 = vmatprep.subr.mxu0 %v302
    %412 = vmatpush1.msra.mxu0 %v301
    %413 = vmatprep.subr.mxu0 %v305
    %414 = vmatpush1.msra.mxu0 %v304
    %415 = vmatprep.subr.mxu0 %v308
    %416 = vmatpush1.msra.mxu0 %v307
    %417 = vmatprep.subr.mxu0 %v311
    %418 = vmatpush1.msra.mxu0 %v310
    %419 = vmatprep.subr.mxu0 %v314
    %420 = vmatpush1.msra.mxu0 %v313
    %421 = vmatprep.subr.mxu0 %v317
    %422 = vmatpush1.msra.mxu0 %v316
    %423 = vmatprep.subr.mxu0 %v320
    %424 = vmatpush1.msra.mxu0 %v319
    %425 = vmatprep.subr.mxu0 %v323
    %426 = vmatpush1.msra.mxu0 %v322
    %427 = vmatprep.subr.mxu0 %v326
    %428 = vmatpush1.msra.mxu0 %v325
    %429 = vmatprep.subr.mxu0 %v329
    %430 = vmatpush1.msra.mxu0 %v328
    %431 = vmatprep.subr.mxu0 %v332
    %432 = vmatpush1.msra.mxu0 %v331
    %433 = vmatprep.subr.mxu0 %v335
    %434 = vmatpush1.msra.mxu0 %v334
    %435 = vmatprep.subr.mxu0 %v338
    %436 = vmatpush1.msra.mxu0 %v337
    %437 = vmatprep.subr.mxu0 %v341
    %438 = vmatpush1.msra.mxu0 %v340
    %439 = vmatprep.subr.mxu0 %v344
    %440 = vmatpush1.msra.mxu0 %v343
    %441 = vmatprep.mubr.f32.mxu0 %v248
    %442 = vmatmul.mubr.f32.gmra.mrb[0].mxu0 %v247
    %v443 = vpop.f32.mrb[0].mxu0
    %v444 = vadd.f32 %v182, %v443
    %v445 = vpop.f32.mrb[0].mxu0
    %v446 = vadd.f32 %v183, %v445
    %447 = vdwg.mxu0
    %448 = vmatprep.subr.mxu0 %v347
    %449 = vmatpush1.msra.mxu0 %v346
    %450 = vmatprep.subr.mxu0 %v350
    %451 = vmatpush1.msra.mxu0 %v349
    %452 = vmatprep.subr.mxu0 %v353
    %453 = vmatpush1.msra.mxu0 %v352
    %454 = vmatprep.subr.mxu0 %v356
    %455 = vmatpush1.msra.mxu0 %v355
    %456 = vmatprep.subr.mxu0 %v359
    %457 = vmatpush1.msra.mxu0 %v358
    %458 = vmatprep.subr.mxu0 %v372
    %459 = vmatpush1.msra.mxu0 %v369
    %460 = vmatprep.subr.mxu0 0.0
    %461 = vmatpush1.msra.mxu0 0.0
    %462 = vmatprep.subr.mxu0 0.0
    %463 = vmatpush1.msra.mxu0 0.0
    %464 = vmatprep.subr.mxu0 0.0
    %465 = vmatpush1.msra.mxu0 0.0
    %466 = vmatprep.subr.mxu0 0.0
    %467 = vmatpush1.msra.mxu0 0.0
    %468 = vmatprep.subr.mxu0 0.0
    %469 = vmatpush1.msra.mxu0 0.0
    %470 = vmatprep.subr.mxu0 0.0
    %471 = vmatpush1.msra.mxu0 0.0
    %472 = vmatprep.subr.mxu0 0.0
    %473 = vmatpush1.msra.mxu0 0.0
    %474 = vmatprep.subr.mxu0 0.0
    %475 = vmatpush1.msra.mxu0 0.0
    %476 = vmatprep.subr.mxu0 0.0
    %477 = vmatpush1.msra.mxu0 0.0
    %478 = vmatprep.subr.mxu0 0.0
    %479 = vmatpush1.msra.mxu0 0.0
    %480 = vmatprep.subr.mxu0 0.0
    %481 = vmatpush1.msra.mxu0 0.0
    %482 = vmatprep.subr.mxu0 0.0
    %483 = vmatpush1.msra.mxu0 0.0
    %484 = vmatprep.subr.mxu0 0.0
    %485 = vmatpush1.msra.mxu0 0.0
    %486 = vmatprep.subr.mxu0 0.0
    %487 = vmatpush1.msra.mxu0 0.0
    %488 = vmatprep.subr.mxu0 0.0
    %489 = vmatpush1.msra.mxu0 0.0
    %490 = vmatprep.subr.mxu0 0.0
    %491 = vmatpush1.msra.mxu0 0.0
    %492 = vmatprep.subr.mxu0 0.0
    %493 = vmatpush1.msra.mxu0 0.0
    %494 = vmatprep.subr.mxu0 0.0
    %495 = vmatpush1.msra.mxu0 0.0
    %496 = vmatprep.subr.mxu0 0.0
    %497 = vmatpush1.msra.mxu0 0.0
    %498 = vmatprep.subr.mxu0 0.0
    %499 = vmatpush1.msra.mxu0 0.0
    %500 = vmatprep.subr.mxu0 0.0
    %501 = vmatpush1.msra.mxu0 0.0
    %502 = vmatprep.subr.mxu0 0.0
    %503 = vmatpush1.msra.mxu0 0.0
    %504 = vmatprep.subr.mxu0 0.0
    %505 = vmatpush1.msra.mxu0 0.0
    %506 = vmatprep.subr.mxu0 0.0
    %507 = vmatpush1.msra.mxu0 0.0
    %508 = vmatprep.subr.mxu0 0.0
    %509 = vmatpush1.msra.mxu0 0.0
    %510 = vmatprep.subr.mxu0 0.0
    %511 = vmatpush1.msra.mxu0 0.0
    %512 = vmatprep.mubr.f32.mxu0 0.0
    %513 = vmatmul.mubr.f32.gmra.mrb[0].mxu0 %v365
    %v514 = vpop.f32.mrb[0].mxu0
    %v515 = vadd.f32 %v444, %v514
    %v516 = vpop.f32.mrb[0].mxu0
    %v517 = vadd.f32 %v446, %v516
    %518 = vdwg.mxu0
    %519 = vmatprep.subr.mxu0 0.0
    %520 = vmatpush1.msra.mxu0 %v252
    %521 = vmatprep.subr.mxu0 0.0
    %522 = vmatpush1.msra.mxu0 %v255
    %523 = vmatprep.subr.mxu0 0.0
    %524 = vmatpush1.msra.mxu0 %v258
    %525 = vmatprep.subr.mxu0 0.0
    %526 = vmatpush1.msra.mxu0 %v261
    %527 = vmatprep.subr.mxu0 0.0
    %528 = vmatpush1.msra.mxu0 %v264
    %529 = vmatprep.subr.mxu0 0.0
    %530 = vmatpush1.msra.mxu0 %v267
    %531 = vmatprep.subr.mxu0 0.0
    %532 = vmatpush1.msra.mxu0 %v270
    %533 = vmatprep.subr.mxu0 0.0
    %534 = vmatpush1.msra.mxu0 %v273
    %535 = vmatprep.subr.mxu0 0.0
    %536 = vmatpush1.msra.mxu0 %v276
    %537 = vmatprep.subr.mxu0 0.0
    %538 = vmatpush1.msra.mxu0 %v279
    %539 = vmatprep.subr.mxu0 0.0
    %540 = vmatpush1.msra.mxu0 %v282
    %541 = vmatprep.subr.mxu0 0.0
    %542 = vmatpush1.msra.mxu0 %v285
    %543 = vmatprep.subr.mxu0 0.0
    %544 = vmatpush1.msra.mxu0 %v288
    %545 = vmatprep.subr.mxu0 0.0
    %546 = vmatpush1.msra.mxu0 %v291
    %547 = vmatprep.subr.mxu0 0.0
    %548 = vmatpush1.msra.mxu0 %v294
    %549 = vmatprep.subr.mxu0 0.0
    %550 = vmatpush1.msra.mxu0 %v297
    %551 = vmatprep.subr.mxu0 0.0
    %552 = vmatpush1.msra.mxu0 %v300
    %553 = vmatprep.subr.mxu0 0.0
    %554 = vmatpush1.msra.mxu0 %v303
    %555 = vmatprep.subr.mxu0 0.0
    %556 = vmatpush1.msra.mxu0 %v306
    %557 = vmatprep.subr.mxu0 0.0
    %558 = vmatpush1.msra.mxu0 %v309
    %559 = vmatprep.subr.mxu0 0.0
    %560 = vmatpush1.msra.mxu0 %v312
    %561 = vmatprep.subr.mxu0 0.0
    %562 = vmatpush1.msra.mxu0 %v315
    %563 = vmatprep.subr.mxu0 0.0
    %564 = vmatpush1.msra.mxu0 %v318
    %565 = vmatprep.subr.mxu0 0.0
    %566 = vmatpush1.msra.mxu0 %v321
    %567 = vmatprep.subr.mxu0 0.0
    %568 = vmatpush1.msra.mxu0 %v324
    %569 = vmatprep.subr.mxu0 0.0
    %570 = vmatpush1.msra.mxu0 %v327
    %571 = vmatprep.subr.mxu0 0.0
    %572 = vmatpush1.msra.mxu0 %v330
    %573 = vmatprep.subr.mxu0 0.0
    %574 = vmatpush1.msra.mxu0 %v333
    %575 = vmatprep.subr.mxu0 0.0
    %576 = vmatpush1.msra.mxu0 %v336
    %577 = vmatprep.subr.mxu0 0.0
    %578 = vmatpush1.msra.mxu0 %v339
    %579 = vmatprep.subr.mxu0 0.0
    %580 = vmatpush1.msra.mxu0 %v342
    %581 = vmatprep.subr.mxu0 0.0
    %582 = vmatpush1.msra.mxu0 %v345
    %583 = vmatprep.mubr.f32.mxu0 %v248
    %584 = vmatmul.mubr.f32.gmra.mrb[0].mxu0 %v247
    %v585 = vpop.f32.mrb[0].mxu0
    %v586 = vadd.f32 %v184, %v585
    %v587 = vpop.f32.mrb[0].mxu0
    %588 = vdwg.mxu0
    %589 = vmatprep.subr.mxu0 0.0
    %590 = vmatpush1.msra.mxu0 %v348
    %591 = vmatprep.subr.mxu0 0.0
    %592 = vmatpush1.msra.mxu0 %v351
    %593 = vmatprep.subr.mxu0 0.0
    %594 = vmatpush1.msra.mxu0 %v354
    %595 = vmatprep.subr.mxu0 0.0
    %596 = vmatpush1.msra.mxu0 %v357
    %597 = vmatprep.subr.mxu0 0.0
    %598 = vmatpush1.msra.mxu0 %v360
    %599 = vmatprep.subr.mxu0 0.0
    %600 = vmatpush1.msra.mxu0 %v375
    %601 = vmatprep.subr.mxu0 0.0
    %602 = vmatpush1.msra.mxu0 0.0
    %603 = vmatprep.subr.mxu0 0.0
    %604 = vmatpush1.msra.mxu0 0.0
    %605 = vmatprep.subr.mxu0 0.0
    %606 = vmatpush1.msra.mxu0 0.0
    %607 = vmatprep.subr.mxu0 0.0
    %608 = vmatpush1.msra.mxu0 0.0
    %609 = vmatprep.subr.mxu0 0.0
    %610 = vmatpush1.msra.mxu0 0.0
    %611 = vmatprep.subr.mxu0 0.0
    %612 = vmatpush1.msra.mxu0 0.0
    %613 = vmatprep.subr.mxu0 0.0
    %614 = vmatpush1.msra.mxu0 0.0
    %615 = vmatprep.subr.mxu0 0.0
    %616 = vmatpush1.msra.mxu0 0.0
    %617 = vmatprep.subr.mxu0 0.0
    %618 = vmatpush1.msra.mxu0 0.0
    %619 = vmatprep.subr.mxu0 0.0
    %620 = vmatpush1.msra.mxu0 0.0
    %621 = vmatprep.subr.mxu0 0.0
    %622 = vmatpush1.msra.mxu0 0.0
    %623 = vmatprep.subr.mxu0 0.0
    %624 = vmatpush1.msra.mxu0 0.0
    %625 = vmatprep.subr.mxu0 0.0
    %626 = vmatpush1.msra.mxu0 0.0
    %627 = vmatprep.subr.mxu0 0.0
    %628 = vmatpush1.msra.mxu0 0.0
    %629 = vmatprep.subr.mxu0 0.0
    %630 = vmatpush1.msra.mxu0 0.0
    %631 = vmatprep.subr.mxu0 0.0
    %632 = vmatpush1.msra.mxu0 0.0
    %633 = vmatprep.subr.mxu0 0.0
    %634 = vmatpush1.msra.mxu0 0.0
    %635 = vmatprep.subr.mxu0 0.0
    %636 = vmatpush1.msra.mxu0 0.0
    %637 = vmatprep.subr.mxu0 0.0
    %638 = vmatpush1.msra.mxu0 0.0
    %639 = vmatprep.subr.mxu0 0.0
    %640 = vmatpush1.msra.mxu0 0.0
    %641 = vmatprep.subr.mxu0 0.0
    %642 = vmatpush1.msra.mxu0 0.0
    %643 = vmatprep.subr.mxu0 0.0
    %644 = vmatpush1.msra.mxu0 0.0
    %645 = vmatprep.subr.mxu0 0.0
    %646 = vmatpush1.msra.mxu0 0.0
    %647 = vmatprep.subr.mxu0 0.0
    %648 = vmatpush1.msra.mxu0 0.0
    %649 = vmatprep.subr.mxu0 0.0
    %650 = vmatpush1.msra.mxu0 0.0
    %651 = vmatprep.subr.mxu0 0.0
    %652 = vmatpush1.msra.mxu0 0.0
    %653 = vmatprep.mubr.f32.mxu0 0.0
    %654 = vmatmul.mubr.f32.gmra.mrb[0].mxu0 %v365
    %v655 = vpop.f32.mrb[0].mxu0
    %v656 = vadd.f32 %v586, %v655
    %v657 = vpop.f32.mrb[0].mxu0
    %658 = vdwg.mxu0
    %v659 = vtanh.pop %v515
    %v660 = vtanh.pop %v517
    %v661 = vtanh.pop %v656
    %v662 = vadd.f32 %v659, %v660
    %v663 = vsel %vm186, %v661, 0.0
    %v664 = vadd.f32 %v662, %v663
    %665 = vadd.xlane.f32.xlu0 %v664
    %v666 = vpop.xlane.xlu0 %665
    %v667 = vmul.f32 %v666, %v191
    %v668 = vsub.f32 %v659, %v667
    %v669 = vsub.f32 %v660, %v667
    %v670 = vsub.f32 %v661, %v667
    %v671 = vmul.f32 %v668, %v668
    %v672 = vmul.f32 %v669, %v669
    %v673 = vmul.f32 %v670, %v670
    %v674 = vadd.f32 %v671, %v672
    %v675 = vsel %vm186, %v673, 0.0
    %v676 = vadd.f32 %v674, %v675
    %677 = vadd.xlane.f32.xlu0 %v676
    %v678 = vpop.xlane.xlu0 %677
    %v679 = vmul.f32 %v678, %v191
    %v680 = vadd.f32 %v679, 1e-05
    %v681 = vrsqrt.pop %v680
    %v682 = vmul.f32 %v668, %v681
    %v683 = vmul.f32 %v669, %v681
    %v684 = vmul.f32 %v670, %v681
    %s685 = scalar_lea.vmem %s2, 3
    %v686 = vld [vmem:[%s685] sm:$0x7]
    %v688 = vlaneseq
    %v689 = vshrl.u32 %v688, 7
    %v690 = vsub.s32 0, %v689
    %v691 = vrot.slane %v686, %v690
    %v692 = vlaneseq
    %v693 = vshrl.u32 %v692, 7
    %v694 = vsub.s32 1, %v693
    %v695 = vrot.slane %v686, %v694
    %v696 = vlaneseq
    %v697 = vshrl.u32 %v696, 7
    %v698 = vsub.s32 2, %v697
    %v699 = vrot.slane %v686, %v698
    %v703 = vmul.f32 %v682, %v691
    %v704 = vmul.f32 %v683, %v695
    %v705 = vmul.f32 %v684, %v699
    %s706 = scalar_lea.vmem %s3, 3
    %v707 = vld [vmem:[%s706] sm:$0x7]
    %v709 = vlaneseq
    %v710 = vshrl.u32 %v709, 7
    %v711 = vsub.s32 0, %v710
    %v712 = vrot.slane %v707, %v711
    %v713 = vlaneseq
    %v714 = vshrl.u32 %v713, 7
    %v715 = vsub.s32 1, %v714
    %v716 = vrot.slane %v707, %v715
    %v717 = vlaneseq
    %v718 = vshrl.u32 %v717, 7
    %v719 = vsub.s32 2, %v718
    %v720 = vrot.slane %v707, %v719
    %v724 = vadd.f32 %v703, %v712
    %v725 = vadd.f32 %v704, %v716
    %v726 = vadd.f32 %v705, %v720
    %s727 = scalar_lea.vmem %s4, 912
    %v728 = vld [vmem:[%s727] sm:$0xff]
    %v729 = vld [vmem:[%s727 + $0x8] sm:$0xff]
    %v730 = vld [vmem:[%s727 + $0x10] sm:$0xff]
    %v731 = vld [vmem:[%s727 + $0x18] sm:$0xff]
    %v732 = vld [vmem:[%s727 + $0x20] sm:$0xff]
    %v733 = vld [vmem:[%s727 + $0x28] sm:$0xff]
    %v734 = vld [vmem:[%s727 + $0x30] sm:$0xff]
    %v735 = vld [vmem:[%s727 + $0x38] sm:$0xff]
    %v736 = vld [vmem:[%s727 + $0x40] sm:$0xff]
    %v737 = vld [vmem:[%s727 + $0x48] sm:$0xff]
    %v738 = vld [vmem:[%s727 + $0x50] sm:$0xff]
    %v739 = vld [vmem:[%s727 + $0x58] sm:$0xff]
    %v740 = vld [vmem:[%s727 + $0x60] sm:$0xff]
    %v741 = vld [vmem:[%s727 + $0x68] sm:$0xff]
    %v742 = vld [vmem:[%s727 + $0x70] sm:$0xff]
    %v743 = vld [vmem:[%s727 + $0x78] sm:$0xff]
    %v744 = vld [vmem:[%s727 + $0x80] sm:$0xff]
    %v745 = vld [vmem:[%s727 + $0x88] sm:$0xff]
    %v746 = vld [vmem:[%s727 + $0x90] sm:$0xff]
    %v747 = vld [vmem:[%s727 + $0x98] sm:$0xff]
    %v748 = vld [vmem:[%s727 + $0xa0] sm:$0xff]
    %v749 = vld [vmem:[%s727 + $0xa8] sm:$0xff]
    %v750 = vld [vmem:[%s727 + $0xb0] sm:$0xff]
    %v751 = vld [vmem:[%s727 + $0xb8] sm:$0xff]
    %v752 = vld [vmem:[%s727 + $0xc0] sm:$0xff]
    %v753 = vld [vmem:[%s727 + $0xc8] sm:$0xff]
    %v754 = vld [vmem:[%s727 + $0xd0] sm:$0xff]
    %v755 = vld [vmem:[%s727 + $0xd8] sm:$0xff]
    %v756 = vld [vmem:[%s727 + $0xe0] sm:$0xff]
    %v757 = vld [vmem:[%s727 + $0xe8] sm:$0xff]
    %v758 = vld [vmem:[%s727 + $0xf0] sm:$0xff]
    %v759 = vld [vmem:[%s727 + $0xf8] sm:$0xff]
    %v760 = vld [vmem:[%s727 + $0x100] sm:$0xff]
    %v761 = vld [vmem:[%s727 + $0x108] sm:$0xff]
    %v762 = vld [vmem:[%s727 + $0x110] sm:$0xff]
    %v763 = vld [vmem:[%s727 + $0x118] sm:$0xff]
    %v764 = vld [vmem:[%s727 + $0x120] sm:$0xff]
    %v765 = vld [vmem:[%s727 + $0x128] sm:$0xff]
    %v766 = vld [vmem:[%s727 + $0x130] sm:$0xff]
    %v767 = vld [vmem:[%s727 + $0x138] sm:$0xff]
    %v768 = vld [vmem:[%s727 + $0x140] sm:$0xff]
    %v769 = vld [vmem:[%s727 + $0x148] sm:$0xff]
    %v770 = vld [vmem:[%s727 + $0x150] sm:$0xff]
    %v771 = vld [vmem:[%s727 + $0x158] sm:$0xff]
    %v772 = vld [vmem:[%s727 + $0x160] sm:$0xff]
    %v773 = vld [vmem:[%s727 + $0x168] sm:$0xff]
    %v774 = vld [vmem:[%s727 + $0x170] sm:$0xff]
    %v775 = vld [vmem:[%s727 + $0x178] sm:$0xff]
    %v776 = vld [vmem:[%s727 + $0x180] sm:$0xff]
    %v777 = vld [vmem:[%s727 + $0x188] sm:$0xff]
    %v778 = vld [vmem:[%s727 + $0x190] sm:$0xff]
    %v779 = vld [vmem:[%s727 + $0x198] sm:$0xff]
    %v780 = vld [vmem:[%s727 + $0x1a0] sm:$0xff]
    %v781 = vld [vmem:[%s727 + $0x1a8] sm:$0xff]
    %v782 = vld [vmem:[%s727 + $0x1b0] sm:$0xff]
    %v783 = vld [vmem:[%s727 + $0x1b8] sm:$0xff]
    %v784 = vld [vmem:[%s727 + $0x1c0] sm:$0xff]
    %v785 = vld [vmem:[%s727 + $0x1c8] sm:$0xff]
    %v786 = vld [vmem:[%s727 + $0x1d0] sm:$0xff]
    %v787 = vld [vmem:[%s727 + $0x1d8] sm:$0xff]
    %v788 = vld [vmem:[%s727 + $0x1e0] sm:$0xff]
    %v789 = vld [vmem:[%s727 + $0x1e8] sm:$0xff]
    %v790 = vld [vmem:[%s727 + $0x1f0] sm:$0xff]
    %v791 = vld [vmem:[%s727 + $0x1f8] sm:$0xff]
    %v792 = vld [vmem:[%s727 + $0x200] sm:$0xff]
    %v793 = vld [vmem:[%s727 + $0x208] sm:$0xff]
    %v794 = vld [vmem:[%s727 + $0x210] sm:$0xff]
    %v795 = vld [vmem:[%s727 + $0x218] sm:$0xff]
    %v796 = vld [vmem:[%s727 + $0x220] sm:$0xff]
    %v797 = vld [vmem:[%s727 + $0x228] sm:$0xff]
    %v798 = vld [vmem:[%s727 + $0x230] sm:$0xff]
    %v799 = vld [vmem:[%s727 + $0x238] sm:$0xff]
    %v800 = vld [vmem:[%s727 + $0x240] sm:$0xff]
    %v801 = vld [vmem:[%s727 + $0x248] sm:$0xff]
    %v802 = vld [vmem:[%s727 + $0x250] sm:$0xff]
    %v803 = vld [vmem:[%s727 + $0x258] sm:$0xff]
    %v804 = vld [vmem:[%s727 + $0x260] sm:$0xff]
    %v805 = vld [vmem:[%s727 + $0x268] sm:$0xff]
    %v806 = vld [vmem:[%s727 + $0x270] sm:$0xff]
    %v807 = vld [vmem:[%s727 + $0x278] sm:$0xff]
    %v808 = vld [vmem:[%s727 + $0x280] sm:$0xff]
    %v809 = vld [vmem:[%s727 + $0x288] sm:$0xff]
    %v810 = vld [vmem:[%s727 + $0x290] sm:$0xff]
    %v811 = vld [vmem:[%s727 + $0x298] sm:$0xff]
    %v812 = vld [vmem:[%s727 + $0x2a0] sm:$0xff]
    %v813 = vld [vmem:[%s727 + $0x2a8] sm:$0xff]
    %v814 = vld [vmem:[%s727 + $0x2b0] sm:$0xff]
    %v815 = vld [vmem:[%s727 + $0x2b8] sm:$0xff]
    %v816 = vld [vmem:[%s727 + $0x2c0] sm:$0xff]
    %v817 = vld [vmem:[%s727 + $0x2c8] sm:$0xff]
    %v818 = vld [vmem:[%s727 + $0x2d0] sm:$0xff]
    %v819 = vld [vmem:[%s727 + $0x2d8] sm:$0xff]
    %v820 = vld [vmem:[%s727 + $0x2e0] sm:$0xff]
    %v821 = vld [vmem:[%s727 + $0x2e8] sm:$0xff]
    %v822 = vld [vmem:[%s727 + $0x2f0] sm:$0xff]
    %v823 = vld [vmem:[%s727 + $0x2f8] sm:$0xff]
    %v824 = vld [vmem:[%s727 + $0x300] sm:$0xff]
    %v825 = vld [vmem:[%s727 + $0x308] sm:$0xff]
    %v826 = vld [vmem:[%s727 + $0x310] sm:$0xff]
    %v827 = vld [vmem:[%s727 + $0x318] sm:$0xff]
    %v828 = vld [vmem:[%s727 + $0x320] sm:$0xff]
    %v829 = vld [vmem:[%s727 + $0x328] sm:$0xff]
    %v830 = vld [vmem:[%s727 + $0x330] sm:$0xff]
    %v831 = vld [vmem:[%s727 + $0x338] sm:$0xff]
    %v832 = vld [vmem:[%s727 + $0x340] sm:$0xff]
    %v833 = vld [vmem:[%s727 + $0x348] sm:$0xff]
    %v834 = vld [vmem:[%s727 + $0x350] sm:$0xff]
    %v835 = vld [vmem:[%s727 + $0x358] sm:$0xff]
    %v836 = vld [vmem:[%s727 + $0x360] sm:$0xff]
    %v837 = vld [vmem:[%s727 + $0x368] sm:$0xff]
    %v838 = vld [vmem:[%s727 + $0x370] sm:$0xff]
    %v839 = vld [vmem:[%s727 + $0x378] sm:$0xf]
    %v840 = vld [vmem:[%s727 + $0x380] sm:$0xf]
    %v841 = vld [vmem:[%s727 + $0x388] sm:$0xf]
    %v843 = vsel %vm186, %v726, 0
    %v846 = vsel %vm367, %v839, 0
    %v849 = vsel %vm367, %v840, 0
    %v852 = vsel %vm367, %v841, 0
    %854 = vmatprep.subr.mxu0 %v729
    %855 = vmatpush1.msra.mxu0 %v728
    %856 = vmatprep.subr.mxu0 %v732
    %857 = vmatpush1.msra.mxu0 %v731
    %858 = vmatprep.subr.mxu0 %v735
    %859 = vmatpush1.msra.mxu0 %v734
    %860 = vmatprep.subr.mxu0 %v738
    %861 = vmatpush1.msra.mxu0 %v737
    %862 = vmatprep.subr.mxu0 %v741
    %863 = vmatpush1.msra.mxu0 %v740
    %864 = vmatprep.subr.mxu0 %v744
    %865 = vmatpush1.msra.mxu0 %v743
    %866 = vmatprep.subr.mxu0 %v747
    %867 = vmatpush1.msra.mxu0 %v746
    %868 = vmatprep.subr.mxu0 %v750
    %869 = vmatpush1.msra.mxu0 %v749
    %870 = vmatprep.subr.mxu0 %v753
    %871 = vmatpush1.msra.mxu0 %v752
    %872 = vmatprep.subr.mxu0 %v756
    %873 = vmatpush1.msra.mxu0 %v755
    %874 = vmatprep.subr.mxu0 %v759
    %875 = vmatpush1.msra.mxu0 %v758
    %876 = vmatprep.subr.mxu0 %v762
    %877 = vmatpush1.msra.mxu0 %v761
    %878 = vmatprep.subr.mxu0 %v765
    %879 = vmatpush1.msra.mxu0 %v764
    %880 = vmatprep.subr.mxu0 %v768
    %881 = vmatpush1.msra.mxu0 %v767
    %882 = vmatprep.subr.mxu0 %v771
    %883 = vmatpush1.msra.mxu0 %v770
    %884 = vmatprep.subr.mxu0 %v774
    %885 = vmatpush1.msra.mxu0 %v773
    %886 = vmatprep.subr.mxu0 %v777
    %887 = vmatpush1.msra.mxu0 %v776
    %888 = vmatprep.subr.mxu0 %v780
    %889 = vmatpush1.msra.mxu0 %v779
    %890 = vmatprep.subr.mxu0 %v783
    %891 = vmatpush1.msra.mxu0 %v782
    %892 = vmatprep.subr.mxu0 %v786
    %893 = vmatpush1.msra.mxu0 %v785
    %894 = vmatprep.subr.mxu0 %v789
    %895 = vmatpush1.msra.mxu0 %v788
    %896 = vmatprep.subr.mxu0 %v792
    %897 = vmatpush1.msra.mxu0 %v791
    %898 = vmatprep.subr.mxu0 %v795
    %899 = vmatpush1.msra.mxu0 %v794
    %900 = vmatprep.subr.mxu0 %v798
    %901 = vmatpush1.msra.mxu0 %v797
    %902 = vmatprep.subr.mxu0 %v801
    %903 = vmatpush1.msra.mxu0 %v800
    %904 = vmatprep.subr.mxu0 %v804
    %905 = vmatpush1.msra.mxu0 %v803
    %906 = vmatprep.subr.mxu0 %v807
    %907 = vmatpush1.msra.mxu0 %v806
    %908 = vmatprep.subr.mxu0 %v810
    %909 = vmatpush1.msra.mxu0 %v809
    %910 = vmatprep.subr.mxu0 %v813
    %911 = vmatpush1.msra.mxu0 %v812
    %912 = vmatprep.subr.mxu0 %v816
    %913 = vmatpush1.msra.mxu0 %v815
    %914 = vmatprep.subr.mxu0 %v819
    %915 = vmatpush1.msra.mxu0 %v818
    %916 = vmatprep.subr.mxu0 %v822
    %917 = vmatpush1.msra.mxu0 %v821
    %918 = vmatprep.mubr.f32.mxu0 %v725
    %919 = vmatmul.mubr.f32.gmra.mrb[0].mxu0 %v724
    %v920 = vpop.f32.mrb[0].mxu0
    %v921 = vadd.f32 %v659, %v920
    %v922 = vpop.f32.mrb[0].mxu0
    %v923 = vadd.f32 %v660, %v922
    %924 = vdwg.mxu0
    %925 = vmatprep.subr.mxu0 %v825
    %926 = vmatpush1.msra.mxu0 %v824
    %927 = vmatprep.subr.mxu0 %v828
    %928 = vmatpush1.msra.mxu0 %v827
    %929 = vmatprep.subr.mxu0 %v831
    %930 = vmatpush1.msra.mxu0 %v830
    %931 = vmatprep.subr.mxu0 %v834
    %932 = vmatpush1.msra.mxu0 %v833
    %933 = vmatprep.subr.mxu0 %v837
    %934 = vmatpush1.msra.mxu0 %v836
    %935 = vmatprep.subr.mxu0 %v849
    %936 = vmatpush1.msra.mxu0 %v846
    %937 = vmatprep.subr.mxu0 0.0
    %938 = vmatpush1.msra.mxu0 0.0
    %939 = vmatprep.subr.mxu0 0.0
    %940 = vmatpush1.msra.mxu0 0.0
    %941 = vmatprep.subr.mxu0 0.0
    %942 = vmatpush1.msra.mxu0 0.0
    %943 = vmatprep.subr.mxu0 0.0
    %944 = vmatpush1.msra.mxu0 0.0
    %945 = vmatprep.subr.mxu0 0.0
    %946 = vmatpush1.msra.mxu0 0.0
    %947 = vmatprep.subr.mxu0 0.0
    %948 = vmatpush1.msra.mxu0 0.0
    %949 = vmatprep.subr.mxu0 0.0
    %950 = vmatpush1.msra.mxu0 0.0
    %951 = vmatprep.subr.mxu0 0.0
    %952 = vmatpush1.msra.mxu0 0.0
    %953 = vmatprep.subr.mxu0 0.0
    %954 = vmatpush1.msra.mxu0 0.0
    %955 = vmatprep.subr.mxu0 0.0
    %956 = vmatpush1.msra.mxu0 0.0
    %957 = vmatprep.subr.mxu0 0.0
    %958 = vmatpush1.msra.mxu0 0.0
    %959 = vmatprep.subr.mxu0 0.0
    %960 = vmatpush1.msra.mxu0 0.0
    %961 = vmatprep.subr.mxu0 0.0
    %962 = vmatpush1.msra.mxu0 0.0
    %963 = vmatprep.subr.mxu0 0.0
    %964 = vmatpush1.msra.mxu0 0.0
    %965 = vmatprep.subr.mxu0 0.0
    %966 = vmatpush1.msra.mxu0 0.0
    %967 = vmatprep.subr.mxu0 0.0
    %968 = vmatpush1.msra.mxu0 0.0
    %969 = vmatprep.subr.mxu0 0.0
    %970 = vmatpush1.msra.mxu0 0.0
    %971 = vmatprep.subr.mxu0 0.0
    %972 = vmatpush1.msra.mxu0 0.0
    %973 = vmatprep.subr.mxu0 0.0
    %974 = vmatpush1.msra.mxu0 0.0
    %975 = vmatprep.subr.mxu0 0.0
    %976 = vmatpush1.msra.mxu0 0.0
    %977 = vmatprep.subr.mxu0 0.0
    %978 = vmatpush1.msra.mxu0 0.0
    %979 = vmatprep.subr.mxu0 0.0
    %980 = vmatpush1.msra.mxu0 0.0
    %981 = vmatprep.subr.mxu0 0.0
    %982 = vmatpush1.msra.mxu0 0.0
    %983 = vmatprep.subr.mxu0 0.0
    %984 = vmatpush1.msra.mxu0 0.0
    %985 = vmatprep.subr.mxu0 0.0
    %986 = vmatpush1.msra.mxu0 0.0
    %987 = vmatprep.subr.mxu0 0.0
    %988 = vmatpush1.msra.mxu0 0.0
    %989 = vmatprep.mubr.f32.mxu0 0.0
    %990 = vmatmul.mubr.f32.gmra.mrb[0].mxu0 %v843
    %v991 = vpop.f32.mrb[0].mxu0
    %v992 = vadd.f32 %v921, %v991
    %v993 = vpop.f32.mrb[0].mxu0
    %v994 = vadd.f32 %v923, %v993
    %995 = vdwg.mxu0
    %996 = vmatprep.subr.mxu0 0.0
    %997 = vmatpush1.msra.mxu0 %v730
    %998 = vmatprep.subr.mxu0 0.0
    %999 = vmatpush1.msra.mxu0 %v733
    %1000 = vmatprep.subr.mxu0 0.0
    %1001 = vmatpush1.msra.mxu0 %v736
    %1002 = vmatprep.subr.mxu0 0.0
    %1003 = vmatpush1.msra.mxu0 %v739
    %1004 = vmatprep.subr.mxu0 0.0
    %1005 = vmatpush1.msra.mxu0 %v742
    %1006 = vmatprep.subr.mxu0 0.0
    %1007 = vmatpush1.msra.mxu0 %v745
    %1008 = vmatprep.subr.mxu0 0.0
    %1009 = vmatpush1.msra.mxu0 %v748
    %1010 = vmatprep.subr.mxu0 0.0
    %1011 = vmatpush1.msra.mxu0 %v751
    %1012 = vmatprep.subr.mxu0 0.0
    %1013 = vmatpush1.msra.mxu0 %v754
    %1014 = vmatprep.subr.mxu0 0.0
    %1015 = vmatpush1.msra.mxu0 %v757
    %1016 = vmatprep.subr.mxu0 0.0
    %1017 = vmatpush1.msra.mxu0 %v760
    %1018 = vmatprep.subr.mxu0 0.0
    %1019 = vmatpush1.msra.mxu0 %v763
    %1020 = vmatprep.subr.mxu0 0.0
    %1021 = vmatpush1.msra.mxu0 %v766
    %1022 = vmatprep.subr.mxu0 0.0
    %1023 = vmatpush1.msra.mxu0 %v769
    %1024 = vmatprep.subr.mxu0 0.0
    %1025 = vmatpush1.msra.mxu0 %v772
    %1026 = vmatprep.subr.mxu0 0.0
    %1027 = vmatpush1.msra.mxu0 %v775
    %1028 = vmatprep.subr.mxu0 0.0
    %1029 = vmatpush1.msra.mxu0 %v778
    %1030 = vmatprep.subr.mxu0 0.0
    %1031 = vmatpush1.msra.mxu0 %v781
    %1032 = vmatprep.subr.mxu0 0.0
    %1033 = vmatpush1.msra.mxu0 %v784
    %1034 = vmatprep.subr.mxu0 0.0
    %1035 = vmatpush1.msra.mxu0 %v787
    %1036 = vmatprep.subr.mxu0 0.0
    %1037 = vmatpush1.msra.mxu0 %v790
    %1038 = vmatprep.subr.mxu0 0.0
    %1039 = vmatpush1.msra.mxu0 %v793
    %1040 = vmatprep.subr.mxu0 0.0
    %1041 = vmatpush1.msra.mxu0 %v796
    %1042 = vmatprep.subr.mxu0 0.0
    %1043 = vmatpush1.msra.mxu0 %v799
    %1044 = vmatprep.subr.mxu0 0.0
    %1045 = vmatpush1.msra.mxu0 %v802
    %1046 = vmatprep.subr.mxu0 0.0
    %1047 = vmatpush1.msra.mxu0 %v805
    %1048 = vmatprep.subr.mxu0 0.0
    %1049 = vmatpush1.msra.mxu0 %v808
    %1050 = vmatprep.subr.mxu0 0.0
    %1051 = vmatpush1.msra.mxu0 %v811
    %1052 = vmatprep.subr.mxu0 0.0
    %1053 = vmatpush1.msra.mxu0 %v814
    %1054 = vmatprep.subr.mxu0 0.0
    %1055 = vmatpush1.msra.mxu0 %v817
    %1056 = vmatprep.subr.mxu0 0.0
    %1057 = vmatpush1.msra.mxu0 %v820
    %1058 = vmatprep.subr.mxu0 0.0
    %1059 = vmatpush1.msra.mxu0 %v823
    %1060 = vmatprep.mubr.f32.mxu0 %v725
    %1061 = vmatmul.mubr.f32.gmra.mrb[0].mxu0 %v724
    %v1062 = vpop.f32.mrb[0].mxu0
    %v1063 = vadd.f32 %v661, %v1062
    %v1064 = vpop.f32.mrb[0].mxu0
    %1065 = vdwg.mxu0
    %1066 = vmatprep.subr.mxu0 0.0
    %1067 = vmatpush1.msra.mxu0 %v826
    %1068 = vmatprep.subr.mxu0 0.0
    %1069 = vmatpush1.msra.mxu0 %v829
    %1070 = vmatprep.subr.mxu0 0.0
    %1071 = vmatpush1.msra.mxu0 %v832
    %1072 = vmatprep.subr.mxu0 0.0
    %1073 = vmatpush1.msra.mxu0 %v835
    %1074 = vmatprep.subr.mxu0 0.0
    %1075 = vmatpush1.msra.mxu0 %v838
    %1076 = vmatprep.subr.mxu0 0.0
    %1077 = vmatpush1.msra.mxu0 %v852
    %1078 = vmatprep.subr.mxu0 0.0
    %1079 = vmatpush1.msra.mxu0 0.0
    %1080 = vmatprep.subr.mxu0 0.0
    %1081 = vmatpush1.msra.mxu0 0.0
    %1082 = vmatprep.subr.mxu0 0.0
    %1083 = vmatpush1.msra.mxu0 0.0
    %1084 = vmatprep.subr.mxu0 0.0
    %1085 = vmatpush1.msra.mxu0 0.0
    %1086 = vmatprep.subr.mxu0 0.0
    %1087 = vmatpush1.msra.mxu0 0.0
    %1088 = vmatprep.subr.mxu0 0.0
    %1089 = vmatpush1.msra.mxu0 0.0
    %1090 = vmatprep.subr.mxu0 0.0
    %1091 = vmatpush1.msra.mxu0 0.0
    %1092 = vmatprep.subr.mxu0 0.0
    %1093 = vmatpush1.msra.mxu0 0.0
    %1094 = vmatprep.subr.mxu0 0.0
    %1095 = vmatpush1.msra.mxu0 0.0
    %1096 = vmatprep.subr.mxu0 0.0
    %1097 = vmatpush1.msra.mxu0 0.0
    %1098 = vmatprep.subr.mxu0 0.0
    %1099 = vmatpush1.msra.mxu0 0.0
    %1100 = vmatprep.subr.mxu0 0.0
    %1101 = vmatpush1.msra.mxu0 0.0
    %1102 = vmatprep.subr.mxu0 0.0
    %1103 = vmatpush1.msra.mxu0 0.0
    %1104 = vmatprep.subr.mxu0 0.0
    %1105 = vmatpush1.msra.mxu0 0.0
    %1106 = vmatprep.subr.mxu0 0.0
    %1107 = vmatpush1.msra.mxu0 0.0
    %1108 = vmatprep.subr.mxu0 0.0
    %1109 = vmatpush1.msra.mxu0 0.0
    %1110 = vmatprep.subr.mxu0 0.0
    %1111 = vmatpush1.msra.mxu0 0.0
    %1112 = vmatprep.subr.mxu0 0.0
    %1113 = vmatpush1.msra.mxu0 0.0
    %1114 = vmatprep.subr.mxu0 0.0
    %1115 = vmatpush1.msra.mxu0 0.0
    %1116 = vmatprep.subr.mxu0 0.0
    %1117 = vmatpush1.msra.mxu0 0.0
    %1118 = vmatprep.subr.mxu0 0.0
    %1119 = vmatpush1.msra.mxu0 0.0
    %1120 = vmatprep.subr.mxu0 0.0
    %1121 = vmatpush1.msra.mxu0 0.0
    %1122 = vmatprep.subr.mxu0 0.0
    %1123 = vmatpush1.msra.mxu0 0.0
    %1124 = vmatprep.subr.mxu0 0.0
    %1125 = vmatpush1.msra.mxu0 0.0
    %1126 = vmatprep.subr.mxu0 0.0
    %1127 = vmatpush1.msra.mxu0 0.0
    %1128 = vmatprep.subr.mxu0 0.0
    %1129 = vmatpush1.msra.mxu0 0.0
    %1130 = vmatprep.mubr.f32.mxu0 0.0
    %1131 = vmatmul.mubr.f32.gmra.mrb[0].mxu0 %v843
    %v1132 = vpop.f32.mrb[0].mxu0
    %v1133 = vadd.f32 %v1063, %v1132
    %v1134 = vpop.f32.mrb[0].mxu0
    %1135 = vdwg.mxu0
    %v1136 = vtanh.pop %v992
    %v1137 = vtanh.pop %v994
    %v1138 = vtanh.pop %v1133
    %v1139 = vadd.f32 %v1136, %v1137
    %v1140 = vsel %vm186, %v1138, 0.0
    %v1141 = vadd.f32 %v1139, %v1140
    %1142 = vadd.xlane.f32.xlu0 %v1141
    %v1143 = vpop.xlane.xlu0 %1142
    %v1144 = vmul.f32 %v1143, %v191
    %v1145 = vsub.f32 %v1136, %v1144
    %v1146 = vsub.f32 %v1137, %v1144
    %v1147 = vsub.f32 %v1138, %v1144
    %v1148 = vmul.f32 %v1145, %v1145
    %v1149 = vmul.f32 %v1146, %v1146
    %v1150 = vmul.f32 %v1147, %v1147
    %v1151 = vadd.f32 %v1148, %v1149
    %v1152 = vsel %vm186, %v1150, 0.0
    %v1153 = vadd.f32 %v1151, %v1152
    %1154 = vadd.xlane.f32.xlu0 %v1153
    %v1155 = vpop.xlane.xlu0 %1154
    %v1156 = vmul.f32 %v1155, %v191
    %v1157 = vadd.f32 %v1156, 1e-05
    %v1158 = vrsqrt.pop %v1157
    %v1159 = vmul.f32 %v1145, %v1158
    %v1160 = vmul.f32 %v1146, %v1158
    %v1161 = vmul.f32 %v1147, %v1158
    %s1162 = scalar_lea.vmem %s2, 6
    %v1163 = vld [vmem:[%s1162] sm:$0x7]
    %v1165 = vlaneseq
    %v1166 = vshrl.u32 %v1165, 7
    %v1167 = vsub.s32 0, %v1166
    %v1168 = vrot.slane %v1163, %v1167
    %v1169 = vlaneseq
    %v1170 = vshrl.u32 %v1169, 7
    %v1171 = vsub.s32 1, %v1170
    %v1172 = vrot.slane %v1163, %v1171
    %v1173 = vlaneseq
    %v1174 = vshrl.u32 %v1173, 7
    %v1175 = vsub.s32 2, %v1174
    %v1176 = vrot.slane %v1163, %v1175
    %v1180 = vmul.f32 %v1159, %v1168
    %v1181 = vmul.f32 %v1160, %v1172
    %v1182 = vmul.f32 %v1161, %v1176
    %s1183 = scalar_lea.vmem %s3, 6
    %v1184 = vld [vmem:[%s1183] sm:$0x7]
    %v1186 = vlaneseq
    %v1187 = vshrl.u32 %v1186, 7
    %v1188 = vsub.s32 0, %v1187
    %v1189 = vrot.slane %v1184, %v1188
    %v1190 = vlaneseq
    %v1191 = vshrl.u32 %v1190, 7
    %v1192 = vsub.s32 1, %v1191
    %v1193 = vrot.slane %v1184, %v1192
    %v1194 = vlaneseq
    %v1195 = vshrl.u32 %v1194, 7
    %v1196 = vsub.s32 2, %v1195
    %v1197 = vrot.slane %v1184, %v1196
    %v1201 = vadd.f32 %v1180, %v1189
    %v1202 = vadd.f32 %v1181, %v1193
    %v1203 = vadd.f32 %v1182, %v1197
    %s1204 = scalar_lea.vmem %s4, 1824
    %v1205 = vld [vmem:[%s1204] sm:$0xff]
    %v1206 = vld [vmem:[%s1204 + $0x8] sm:$0xff]
    %v1207 = vld [vmem:[%s1204 + $0x10] sm:$0xff]
    %v1208 = vld [vmem:[%s1204 + $0x18] sm:$0xff]
    %v1209 = vld [vmem:[%s1204 + $0x20] sm:$0xff]
    %v1210 = vld [vmem:[%s1204 + $0x28] sm:$0xff]
    %v1211 = vld [vmem:[%s1204 + $0x30] sm:$0xff]
    %v1212 = vld [vmem:[%s1204 + $0x38] sm:$0xff]
    %v1213 = vld [vmem:[%s1204 + $0x40] sm:$0xff]
    %v1214 = vld [vmem:[%s1204 + $0x48] sm:$0xff]
    %v1215 = vld [vmem:[%s1204 + $0x50] sm:$0xff]
    %v1216 = vld [vmem:[%s1204 + $0x58] sm:$0xff]
    %v1217 = vld [vmem:[%s1204 + $0x60] sm:$0xff]
    %v1218 = vld [vmem:[%s1204 + $0x68] sm:$0xff]
    %v1219 = vld [vmem:[%s1204 + $0x70] sm:$0xff]
    %v1220 = vld [vmem:[%s1204 + $0x78] sm:$0xff]
    %v1221 = vld [vmem:[%s1204 + $0x80] sm:$0xff]
    %v1222 = vld [vmem:[%s1204 + $0x88] sm:$0xff]
    %v1223 = vld [vmem:[%s1204 + $0x90] sm:$0xff]
    %v1224 = vld [vmem:[%s1204 + $0x98] sm:$0xff]
    %v1225 = vld [vmem:[%s1204 + $0xa0] sm:$0xff]
    %v1226 = vld [vmem:[%s1204 + $0xa8] sm:$0xff]
    %v1227 = vld [vmem:[%s1204 + $0xb0] sm:$0xff]
    %v1228 = vld [vmem:[%s1204 + $0xb8] sm:$0xff]
    %v1229 = vld [vmem:[%s1204 + $0xc0] sm:$0xff]
    %v1230 = vld [vmem:[%s1204 + $0xc8] sm:$0xff]
    %v1231 = vld [vmem:[%s1204 + $0xd0] sm:$0xff]
    %v1232 = vld [vmem:[%s1204 + $0xd8] sm:$0xff]
    %v1233 = vld [vmem:[%s1204 + $0xe0] sm:$0xff]
    %v1234 = vld [vmem:[%s1204 + $0xe8] sm:$0xff]
    %v1235 = vld [vmem:[%s1204 + $0xf0] sm:$0xff]
    %v1236 = vld [vmem:[%s1204 + $0xf8] sm:$0xff]
    %v1237 = vld [vmem:[%s1204 + $0x100] sm:$0xff]
    %v1238 = vld [vmem:[%s1204 + $0x108] sm:$0xff]
    %v1239 = vld [vmem:[%s1204 + $0x110] sm:$0xff]
    %v1240 = vld [vmem:[%s1204 + $0x118] sm:$0xff]
    %v1241 = vld [vmem:[%s1204 + $0x120] sm:$0xff]
    %v1242 = vld [vmem:[%s1204 + $0x128] sm:$0xff]
    %v1243 = vld [vmem:[%s1204 + $0x130] sm:$0xff]
    %v1244 = vld [vmem:[%s1204 + $0x138] sm:$0xff]
    %v1245 = vld [vmem:[%s1204 + $0x140] sm:$0xff]
    %v1246 = vld [vmem:[%s1204 + $0x148] sm:$0xff]
    %v1247 = vld [vmem:[%s1204 + $0x150] sm:$0xff]
    %v1248 = vld [vmem:[%s1204 + $0x158] sm:$0xff]
    %v1249 = vld [vmem:[%s1204 + $0x160] sm:$0xff]
    %v1250 = vld [vmem:[%s1204 + $0x168] sm:$0xff]
    %v1251 = vld [vmem:[%s1204 + $0x170] sm:$0xff]
    %v1252 = vld [vmem:[%s1204 + $0x178] sm:$0xff]
    %v1253 = vld [vmem:[%s1204 + $0x180] sm:$0xff]
    %v1254 = vld [vmem:[%s1204 + $0x188] sm:$0xff]
    %v1255 = vld [vmem:[%s1204 + $0x190] sm:$0xff]
    %v1256 = vld [vmem:[%s1204 + $0x198] sm:$0xff]
    %v1257 = vld [vmem:[%s1204 + $0x1a0] sm:$0xff]
    %v1258 = vld [vmem:[%s1204 + $0x1a8] sm:$0xff]
    %v1259 = vld [vmem:[%s1204 + $0x1b0] sm:$0xff]
    %v1260 = vld [vmem:[%s1204 + $0x1b8] sm:$0xff]
    %v1261 = vld [vmem:[%s1204 + $0x1c0] sm:$0xff]
    %v1262 = vld [vmem:[%s1204 + $0x1c8] sm:$0xff]
    %v1263 = vld [vmem:[%s1204 + $0x1d0] sm:$0xff]
    %v1264 = vld [vmem:[%s1204 + $0x1d8] sm:$0xff]
    %v1265 = vld [vmem:[%s1204 + $0x1e0] sm:$0xff]
    %v1266 = vld [vmem:[%s1204 + $0x1e8] sm:$0xff]
    %v1267 = vld [vmem:[%s1204 + $0x1f0] sm:$0xff]
    %v1268 = vld [vmem:[%s1204 + $0x1f8] sm:$0xff]
    %v1269 = vld [vmem:[%s1204 + $0x200] sm:$0xff]
    %v1270 = vld [vmem:[%s1204 + $0x208] sm:$0xff]
    %v1271 = vld [vmem:[%s1204 + $0x210] sm:$0xff]
    %v1272 = vld [vmem:[%s1204 + $0x218] sm:$0xff]
    %v1273 = vld [vmem:[%s1204 + $0x220] sm:$0xff]
    %v1274 = vld [vmem:[%s1204 + $0x228] sm:$0xff]
    %v1275 = vld [vmem:[%s1204 + $0x230] sm:$0xff]
    %v1276 = vld [vmem:[%s1204 + $0x238] sm:$0xff]
    %v1277 = vld [vmem:[%s1204 + $0x240] sm:$0xff]
    %v1278 = vld [vmem:[%s1204 + $0x248] sm:$0xff]
    %v1279 = vld [vmem:[%s1204 + $0x250] sm:$0xff]
    %v1280 = vld [vmem:[%s1204 + $0x258] sm:$0xff]
    %v1281 = vld [vmem:[%s1204 + $0x260] sm:$0xff]
    %v1282 = vld [vmem:[%s1204 + $0x268] sm:$0xff]
    %v1283 = vld [vmem:[%s1204 + $0x270] sm:$0xff]
    %v1284 = vld [vmem:[%s1204 + $0x278] sm:$0xff]
    %v1285 = vld [vmem:[%s1204 + $0x280] sm:$0xff]
    %v1286 = vld [vmem:[%s1204 + $0x288] sm:$0xff]
    %v1287 = vld [vmem:[%s1204 + $0x290] sm:$0xff]
    %v1288 = vld [vmem:[%s1204 + $0x298] sm:$0xff]
    %v1289 = vld [vmem:[%s1204 + $0x2a0] sm:$0xff]
    %v1290 = vld [vmem:[%s1204 + $0x2a8] sm:$0xff]
    %v1291 = vld [vmem:[%s1204 + $0x2b0] sm:$0xff]
    %v1292 = vld [vmem:[%s1204 + $0x2b8] sm:$0xff]
    %v1293 = vld [vmem:[%s1204 + $0x2c0] sm:$0xff]
    %v1294 = vld [vmem:[%s1204 + $0x2c8] sm:$0xff]
    %v1295 = vld [vmem:[%s1204 + $0x2d0] sm:$0xff]
    %v1296 = vld [vmem:[%s1204 + $0x2d8] sm:$0xff]
    %v1297 = vld [vmem:[%s1204 + $0x2e0] sm:$0xff]
    %v1298 = vld [vmem:[%s1204 + $0x2e8] sm:$0xff]
    %v1299 = vld [vmem:[%s1204 + $0x2f0] sm:$0xff]
    %v1300 = vld [vmem:[%s1204 + $0x2f8] sm:$0xff]
    %v1301 = vld [vmem:[%s1204 + $0x300] sm:$0xff]
    %v1302 = vld [vmem:[%s1204 + $0x308] sm:$0xff]
    %v1303 = vld [vmem:[%s1204 + $0x310] sm:$0xff]
    %v1304 = vld [vmem:[%s1204 + $0x318] sm:$0xff]
    %v1305 = vld [vmem:[%s1204 + $0x320] sm:$0xff]
    %v1306 = vld [vmem:[%s1204 + $0x328] sm:$0xff]
    %v1307 = vld [vmem:[%s1204 + $0x330] sm:$0xff]
    %v1308 = vld [vmem:[%s1204 + $0x338] sm:$0xff]
    %v1309 = vld [vmem:[%s1204 + $0x340] sm:$0xff]
    %v1310 = vld [vmem:[%s1204 + $0x348] sm:$0xff]
    %v1311 = vld [vmem:[%s1204 + $0x350] sm:$0xff]
    %v1312 = vld [vmem:[%s1204 + $0x358] sm:$0xff]
    %v1313 = vld [vmem:[%s1204 + $0x360] sm:$0xff]
    %v1314 = vld [vmem:[%s1204 + $0x368] sm:$0xff]
    %v1315 = vld [vmem:[%s1204 + $0x370] sm:$0xff]
    %v1316 = vld [vmem:[%s1204 + $0x378] sm:$0xf]
    %v1317 = vld [vmem:[%s1204 + $0x380] sm:$0xf]
    %v1318 = vld [vmem:[%s1204 + $0x388] sm:$0xf]
    %v1320 = vsel %vm186, %v1203, 0
    %v1323 = vsel %vm367, %v1316, 0
    %v1326 = vsel %vm367, %v1317, 0
    %v1329 = vsel %vm367, %v1318, 0
    %1331 = vmatprep.subr.mxu0 %v1206
    %1332 = vmatpush1.msra.mxu0 %v1205
    %1333 = vmatprep.subr.mxu0 %v1209
    %1334 = vmatpush1.msra.mxu0 %v1208
    %1335 = vmatprep.subr.mxu0 %v1212
    %1336 = vmatpush1.msra.mxu0 %v1211
    %1337 = vmatprep.subr.mxu0 %v1215
    %1338 = vmatpush1.msra.mxu0 %v1214
    %1339 = vmatprep.subr.mxu0 %v1218
    %1340 = vmatpush1.msra.mxu0 %v1217
    %1341 = vmatprep.subr.mxu0 %v1221
    %1342 = vmatpush1.msra.mxu0 %v1220
    %1343 = vmatprep.subr.mxu0 %v1224
    %1344 = vmatpush1.msra.mxu0 %v1223
    %1345 = vmatprep.subr.mxu0 %v1227
    %1346 = vmatpush1.msra.mxu0 %v1226
    %1347 = vmatprep.subr.mxu0 %v1230
    %1348 = vmatpush1.msra.mxu0 %v1229
    %1349 = vmatprep.subr.mxu0 %v1233
    %1350 = vmatpush1.msra.mxu0 %v1232
    %1351 = vmatprep.subr.mxu0 %v1236
    %1352 = vmatpush1.msra.mxu0 %v1235
    %1353 = vmatprep.subr.mxu0 %v1239
    %1354 = vmatpush1.msra.mxu0 %v1238
    %1355 = vmatprep.subr.mxu0 %v1242
    %1356 = vmatpush1.msra.mxu0 %v1241
    %1357 = vmatprep.subr.mxu0 %v1245
    %1358 = vmatpush1.msra.mxu0 %v1244
    %1359 = vmatprep.subr.mxu0 %v1248
    %1360 = vmatpush1.msra.mxu0 %v1247
    %1361 = vmatprep.subr.mxu0 %v1251
    %1362 = vmatpush1.msra.mxu0 %v1250
    %1363 = vmatprep.subr.mxu0 %v1254
    %1364 = vmatpush1.msra.mxu0 %v1253
    %1365 = vmatprep.subr.mxu0 %v1257
    %1366 = vmatpush1.msra.mxu0 %v1256
    %1367 = vmatprep.subr.mxu0 %v1260
    %1368 = vmatpush1.msra.mxu0 %v1259
    %1369 = vmatprep.subr.mxu0 %v1263
    %1370 = vmatpush1.msra.mxu0 %v1262
    %1371 = vmatprep.subr.mxu0 %v1266
    %1372 = vmatpush1.msra.mxu0 %v1265
    %1373 = vmatprep.subr.mxu0 %v1269
    %1374 = vmatpush1.msra.mxu0 %v1268
    %1375 = vmatprep.subr.mxu0 %v1272
    %1376 = vmatpush1.msra.mxu0 %v1271
    %1377 = vmatprep.subr.mxu0 %v1275
    %1378 = vmatpush1.msra.mxu0 %v1274
    %1379 = vmatprep.subr.mxu0 %v1278
    %1380 = vmatpush1.msra.mxu0 %v1277
    %1381 = vmatprep.subr.mxu0 %v1281
    %1382 = vmatpush1.msra.mxu0 %v1280
    %1383 = vmatprep.subr.mxu0 %v1284
    %1384 = vmatpush1.msra.mxu0 %v1283
    %1385 = vmatprep.subr.mxu0 %v1287
    %1386 = vmatpush1.msra.mxu0 %v1286
    %1387 = vmatprep.subr.mxu0 %v1290
    %1388 = vmatpush1.msra.mxu0 %v1289
    %1389 = vmatprep.subr.mxu0 %v1293
    %1390 = vmatpush1.msra.mxu0 %v1292
    %1391 = vmatprep.subr.mxu0 %v1296
    %1392 = vmatpush1.msra.mxu0 %v1295
    %1393 = vmatprep.subr.mxu0 %v1299
    %1394 = vmatpush1.msra.mxu0 %v1298
    %1395 = vmatprep.mubr.f32.mxu0 %v1202
    %1396 = vmatmul.mubr.f32.gmra.mrb[0].mxu0 %v1201
    %v1397 = vpop.f32.mrb[0].mxu0
    %v1398 = vadd.f32 %v1136, %v1397
    %v1399 = vpop.f32.mrb[0].mxu0
    %v1400 = vadd.f32 %v1137, %v1399
    %1401 = vdwg.mxu0
    %1402 = vmatprep.subr.mxu0 %v1302
    %1403 = vmatpush1.msra.mxu0 %v1301
    %1404 = vmatprep.subr.mxu0 %v1305
    %1405 = vmatpush1.msra.mxu0 %v1304
    %1406 = vmatprep.subr.mxu0 %v1308
    %1407 = vmatpush1.msra.mxu0 %v1307
    %1408 = vmatprep.subr.mxu0 %v1311
    %1409 = vmatpush1.msra.mxu0 %v1310
    %1410 = vmatprep.subr.mxu0 %v1314
    %1411 = vmatpush1.msra.mxu0 %v1313
    %1412 = vmatprep.subr.mxu0 %v1326
    %1413 = vmatpush1.msra.mxu0 %v1323
    %1414 = vmatprep.subr.mxu0 0.0
    %1415 = vmatpush1.msra.mxu0 0.0
    %1416 = vmatprep.subr.mxu0 0.0
    %1417 = vmatpush1.msra.mxu0 0.0
    %1418 = vmatprep.subr.mxu0 0.0
    %1419 = vmatpush1.msra.mxu0 0.0
    %1420 = vmatprep.subr.mxu0 0.0
    %1421 = vmatpush1.msra.mxu0 0.0
    %1422 = vmatprep.subr.mxu0 0.0
    %1423 = vmatpush1.msra.mxu0 0.0
    %1424 = vmatprep.subr.mxu0 0.0
    %1425 = vmatpush1.msra.mxu0 0.0
    %1426 = vmatprep.subr.mxu0 0.0
    %1427 = vmatpush1.msra.mxu0 0.0
    %1428 = vmatprep.subr.mxu0 0.0
    %1429 = vmatpush1.msra.mxu0 0.0
    %1430 = vmatprep.subr.mxu0 0.0
    %1431 = vmatpush1.msra.mxu0 0.0
    %1432 = vmatprep.subr.mxu0 0.0
    %1433 = vmatpush1.msra.mxu0 0.0
    %1434 = vmatprep.subr.mxu0 0.0
    %1435 = vmatpush1.msra.mxu0 0.0
    %1436 = vmatprep.subr.mxu0 0.0
    %1437 = vmatpush1.msra.mxu0 0.0
    %1438 = vmatprep.subr.mxu0 0.0
    %1439 = vmatpush1.msra.mxu0 0.0
    %1440 = vmatprep.subr.mxu0 0.0
    %1441 = vmatpush1.msra.mxu0 0.0
    %1442 = vmatprep.subr.mxu0 0.0
    %1443 = vmatpush1.msra.mxu0 0.0
    %1444 = vmatprep.subr.mxu0 0.0
    %1445 = vmatpush1.msra.mxu0 0.0
    %1446 = vmatprep.subr.mxu0 0.0
    %1447 = vmatpush1.msra.mxu0 0.0
    %1448 = vmatprep.subr.mxu0 0.0
    %1449 = vmatpush1.msra.mxu0 0.0
    %1450 = vmatprep.subr.mxu0 0.0
    %1451 = vmatpush1.msra.mxu0 0.0
    %1452 = vmatprep.subr.mxu0 0.0
    %1453 = vmatpush1.msra.mxu0 0.0
    %1454 = vmatprep.subr.mxu0 0.0
    %1455 = vmatpush1.msra.mxu0 0.0
    %1456 = vmatprep.subr.mxu0 0.0
    %1457 = vmatpush1.msra.mxu0 0.0
    %1458 = vmatprep.subr.mxu0 0.0
    %1459 = vmatpush1.msra.mxu0 0.0
    %1460 = vmatprep.subr.mxu0 0.0
    %1461 = vmatpush1.msra.mxu0 0.0
    %1462 = vmatprep.subr.mxu0 0.0
    %1463 = vmatpush1.msra.mxu0 0.0
    %1464 = vmatprep.subr.mxu0 0.0
    %1465 = vmatpush1.msra.mxu0 0.0
    %1466 = vmatprep.mubr.f32.mxu0 0.0
    %1467 = vmatmul.mubr.f32.gmra.mrb[0].mxu0 %v1320
    %v1468 = vpop.f32.mrb[0].mxu0
    %v1469 = vadd.f32 %v1398, %v1468
    %v1470 = vpop.f32.mrb[0].mxu0
    %v1471 = vadd.f32 %v1400, %v1470
    %1472 = vdwg.mxu0
    %1473 = vmatprep.subr.mxu0 0.0
    %1474 = vmatpush1.msra.mxu0 %v1207
    %1475 = vmatprep.subr.mxu0 0.0
    %1476 = vmatpush1.msra.mxu0 %v1210
    %1477 = vmatprep.subr.mxu0 0.0
    %1478 = vmatpush1.msra.mxu0 %v1213
    %1479 = vmatprep.subr.mxu0 0.0
    %1480 = vmatpush1.msra.mxu0 %v1216
    %1481 = vmatprep.subr.mxu0 0.0
    %1482 = vmatpush1.msra.mxu0 %v1219
    %1483 = vmatprep.subr.mxu0 0.0
    %1484 = vmatpush1.msra.mxu0 %v1222
    %1485 = vmatprep.subr.mxu0 0.0
    %1486 = vmatpush1.msra.mxu0 %v1225
    %1487 = vmatprep.subr.mxu0 0.0
    %1488 = vmatpush1.msra.mxu0 %v1228
    %1489 = vmatprep.subr.mxu0 0.0
    %1490 = vmatpush1.msra.mxu0 %v1231
    %1491 = vmatprep.subr.mxu0 0.0
    %1492 = vmatpush1.msra.mxu0 %v1234
    %1493 = vmatprep.subr.mxu0 0.0
    %1494 = vmatpush1.msra.mxu0 %v1237
    %1495 = vmatprep.subr.mxu0 0.0
    %1496 = vmatpush1.msra.mxu0 %v1240
    %1497 = vmatprep.subr.mxu0 0.0
    %1498 = vmatpush1.msra.mxu0 %v1243
    %1499 = vmatprep.subr.mxu0 0.0
    %1500 = vmatpush1.msra.mxu0 %v1246
    %1501 = vmatprep.subr.mxu0 0.0
    %1502 = vmatpush1.msra.mxu0 %v1249
    %1503 = vmatprep.subr.mxu0 0.0
    %1504 = vmatpush1.msra.mxu0 %v1252
    %1505 = vmatprep.subr.mxu0 0.0
    %1506 = vmatpush1.msra.mxu0 %v1255
    %1507 = vmatprep.subr.mxu0 0.0
    %1508 = vmatpush1.msra.mxu0 %v1258
    %1509 = vmatprep.subr.mxu0 0.0
    %1510 = vmatpush1.msra.mxu0 %v1261
    %1511 = vmatprep.subr.mxu0 0.0
    %1512 = vmatpush1.msra.mxu0 %v1264
    %1513 = vmatprep.subr.mxu0 0.0
    %1514 = vmatpush1.msra.mxu0 %v1267
    %1515 = vmatprep.subr.mxu0 0.0
    %1516 = vmatpush1.msra.mxu0 %v1270
    %1517 = vmatprep.subr.mxu0 0.0
    %1518 = vmatpush1.msra.mxu0 %v1273
    %1519 = vmatprep.subr.mxu0 0.0
    %1520 = vmatpush1.msra.mxu0 %v1276
    %1521 = vmatprep.subr.mxu0 0.0
    %1522 = vmatpush1.msra.mxu0 %v1279
    %1523 = vmatprep.subr.mxu0 0.0
    %1524 = vmatpush1.msra.mxu0 %v1282
    %1525 = vmatprep.subr.mxu0 0.0
    %1526 = vmatpush1.msra.mxu0 %v1285
    %1527 = vmatprep.subr.mxu0 0.0
    %1528 = vmatpush1.msra.mxu0 %v1288
    %1529 = vmatprep.subr.mxu0 0.0
    %1530 = vmatpush1.msra.mxu0 %v1291
    %1531 = vmatprep.subr.mxu0 0.0
    %1532 = vmatpush1.msra.mxu0 %v1294
    %1533 = vmatprep.subr.mxu0 0.0
    %1534 = vmatpush1.msra.mxu0 %v1297
    %1535 = vmatprep.subr.mxu0 0.0
    %1536 = vmatpush1.msra.mxu0 %v1300
    %1537 = vmatprep.mubr.f32.mxu0 %v1202
    %1538 = vmatmul.mubr.f32.gmra.mrb[0].mxu0 %v1201
    %v1539 = vpop.f32.mrb[0].mxu0
    %v1540 = vadd.f32 %v1138, %v1539
    %v1541 = vpop.f32.mrb[0].mxu0
    %1542 = vdwg.mxu0
    %1543 = vmatprep.subr.mxu0 0.0
    %1544 = vmatpush1.msra.mxu0 %v1303
    %1545 = vmatprep.subr.mxu0 0.0
    %1546 = vmatpush1.msra.mxu0 %v1306
    %1547 = vmatprep.subr.mxu0 0.0
    %1548 = vmatpush1.msra.mxu0 %v1309
    %1549 = vmatprep.subr.mxu0 0.0
    %1550 = vmatpush1.msra.mxu0 %v1312
    %1551 = vmatprep.subr.mxu0 0.0
    %1552 = vmatpush1.msra.mxu0 %v1315
    %1553 = vmatprep.subr.mxu0 0.0
    %1554 = vmatpush1.msra.mxu0 %v1329
    %1555 = vmatprep.subr.mxu0 0.0
    %1556 = vmatpush1.msra.mxu0 0.0
    %1557 = vmatprep.subr.mxu0 0.0
    %1558 = vmatpush1.msra.mxu0 0.0
    %1559 = vmatprep.subr.mxu0 0.0
    %1560 = vmatpush1.msra.mxu0 0.0
    %1561 = vmatprep.subr.mxu0 0.0
    %1562 = vmatpush1.msra.mxu0 0.0
    %1563 = vmatprep.subr.mxu0 0.0
    %1564 = vmatpush1.msra.mxu0 0.0
    %1565 = vmatprep.subr.mxu0 0.0
    %1566 = vmatpush1.msra.mxu0 0.0
    %1567 = vmatprep.subr.mxu0 0.0
    %1568 = vmatpush1.msra.mxu0 0.0
    %1569 = vmatprep.subr.mxu0 0.0
    %1570 = vmatpush1.msra.mxu0 0.0
    %1571 = vmatprep.subr.mxu0 0.0
    %1572 = vmatpush1.msra.mxu0 0.0
    %1573 = vmatprep.subr.mxu0 0.0
    %1574 = vmatpush1.msra.mxu0 0.0
    %1575 = vmatprep.subr.mxu0 0.0
    %1576 = vmatpush1.msra.mxu0 0.0
    %1577 = vmatprep.subr.mxu0 0.0
    %1578 = vmatpush1.msra.mxu0 0.0
    %1579 = vmatprep.subr.mxu0 0.0
    %1580 = vmatpush1.msra.mxu0 0.0
    %1581 = vmatprep.subr.mxu0 0.0
    %1582 = vmatpush1.msra.mxu0 0.0
    %1583 = vmatprep.subr.mxu0 0.0
    %1584 = vmatpush1.msra.mxu0 0.0
    %1585 = vmatprep.subr.mxu0 0.0
    %1586 = vmatpush1.msra.mxu0 0.0
    %1587 = vmatprep.subr.mxu0 0.0
    %1588 = vmatpush1.msra.mxu0 0.0
    %1589 = vmatprep.subr.mxu0 0.0
    %1590 = vmatpush1.msra.mxu0 0.0
    %1591 = vmatprep.subr.mxu0 0.0
    %1592 = vmatpush1.msra.mxu0 0.0
    %1593 = vmatprep.subr.mxu0 0.0
    %1594 = vmatpush1.msra.mxu0 0.0
    %1595 = vmatprep.subr.mxu0 0.0
    %1596 = vmatpush1.msra.mxu0 0.0
    %1597 = vmatprep.subr.mxu0 0.0
    %1598 = vmatpush1.msra.mxu0 0.0
    %1599 = vmatprep.subr.mxu0 0.0
    %1600 = vmatpush1.msra.mxu0 0.0
    %1601 = vmatprep.subr.mxu0 0.0
    %1602 = vmatpush1.msra.mxu0 0.0
    %1603 = vmatprep.subr.mxu0 0.0
    %1604 = vmatpush1.msra.mxu0 0.0
    %1605 = vmatprep.subr.mxu0 0.0
    %1606 = vmatpush1.msra.mxu0 0.0
    %1607 = vmatprep.mubr.f32.mxu0 0.0
    %1608 = vmatmul.mubr.f32.gmra.mrb[0].mxu0 %v1320
    %v1609 = vpop.f32.mrb[0].mxu0
    %v1610 = vadd.f32 %v1540, %v1609
    %v1611 = vpop.f32.mrb[0].mxu0
    %1612 = vdwg.mxu0
    %v1613 = vtanh.pop %v1469
    %v1614 = vtanh.pop %v1471
    %v1615 = vtanh.pop %v1610
    %v1616 = vadd.f32 %v1613, %v1614
    %v1617 = vsel %vm186, %v1615, 0.0
    %v1618 = vadd.f32 %v1616, %v1617
    %1619 = vadd.xlane.f32.xlu0 %v1618
    %v1620 = vpop.xlane.xlu0 %1619
    %v1621 = vmul.f32 %v1620, %v191
    %v1622 = vsub.f32 %v1613, %v1621
    %v1623 = vsub.f32 %v1614, %v1621
    %v1624 = vsub.f32 %v1615, %v1621
    %v1625 = vmul.f32 %v1622, %v1622
    %v1626 = vmul.f32 %v1623, %v1623
    %v1627 = vmul.f32 %v1624, %v1624
    %v1628 = vadd.f32 %v1625, %v1626
    %v1629 = vsel %vm186, %v1627, 0.0
    %v1630 = vadd.f32 %v1628, %v1629
    %1631 = vadd.xlane.f32.xlu0 %v1630
    %v1632 = vpop.xlane.xlu0 %1631
    %v1633 = vmul.f32 %v1632, %v191
    %v1634 = vadd.f32 %v1633, 1e-05
    %v1635 = vrsqrt.pop %v1634
    %v1636 = vmul.f32 %v1622, %v1635
    %v1637 = vmul.f32 %v1623, %v1635
    %v1638 = vmul.f32 %v1624, %v1635
    %s1639 = scalar_lea.vmem %s2, 9
    %v1640 = vld [vmem:[%s1639] sm:$0x7]
    %v1642 = vlaneseq
    %v1643 = vshrl.u32 %v1642, 7
    %v1644 = vsub.s32 0, %v1643
    %v1645 = vrot.slane %v1640, %v1644
    %v1646 = vlaneseq
    %v1647 = vshrl.u32 %v1646, 7
    %v1648 = vsub.s32 1, %v1647
    %v1649 = vrot.slane %v1640, %v1648
    %v1650 = vlaneseq
    %v1651 = vshrl.u32 %v1650, 7
    %v1652 = vsub.s32 2, %v1651
    %v1653 = vrot.slane %v1640, %v1652
    %v1657 = vmul.f32 %v1636, %v1645
    %v1658 = vmul.f32 %v1637, %v1649
    %v1659 = vmul.f32 %v1638, %v1653
    %s1660 = scalar_lea.vmem %s3, 9
    %v1661 = vld [vmem:[%s1660] sm:$0x7]
    %v1663 = vlaneseq
    %v1664 = vshrl.u32 %v1663, 7
    %v1665 = vsub.s32 0, %v1664
    %v1666 = vrot.slane %v1661, %v1665
    %v1667 = vlaneseq
    %v1668 = vshrl.u32 %v1667, 7
    %v1669 = vsub.s32 1, %v1668
    %v1670 = vrot.slane %v1661, %v1669
    %v1671 = vlaneseq
    %v1672 = vshrl.u32 %v1671, 7
    %v1673 = vsub.s32 2, %v1672
    %v1674 = vrot.slane %v1661, %v1673
    %v1678 = vadd.f32 %v1657, %v1666
    %v1679 = vadd.f32 %v1658, %v1670
    %v1680 = vadd.f32 %v1659, %v1674
    %s1681 = scalar_lea.vmem %s4, 2736
    %v1682 = vld [vmem:[%s1681] sm:$0xff]
    %v1683 = vld [vmem:[%s1681 + $0x8] sm:$0xff]
    %v1684 = vld [vmem:[%s1681 + $0x10] sm:$0xff]
    %v1685 = vld [vmem:[%s1681 + $0x18] sm:$0xff]
    %v1686 = vld [vmem:[%s1681 + $0x20] sm:$0xff]
    %v1687 = vld [vmem:[%s1681 + $0x28] sm:$0xff]
    %v1688 = vld [vmem:[%s1681 + $0x30] sm:$0xff]
    %v1689 = vld [vmem:[%s1681 + $0x38] sm:$0xff]
    %v1690 = vld [vmem:[%s1681 + $0x40] sm:$0xff]
    %v1691 = vld [vmem:[%s1681 + $0x48] sm:$0xff]
    %v1692 = vld [vmem:[%s1681 + $0x50] sm:$0xff]
    %v1693 = vld [vmem:[%s1681 + $0x58] sm:$0xff]
    %v1694 = vld [vmem:[%s1681 + $0x60] sm:$0xff]
    %v1695 = vld [vmem:[%s1681 + $0x68] sm:$0xff]
    %v1696 = vld [vmem:[%s1681 + $0x70] sm:$0xff]
    %v1697 = vld [vmem:[%s1681 + $0x78] sm:$0xff]
    %v1698 = vld [vmem:[%s1681 + $0x80] sm:$0xff]
    %v1699 = vld [vmem:[%s1681 + $0x88] sm:$0xff]
    %v1700 = vld [vmem:[%s1681 + $0x90] sm:$0xff]
    %v1701 = vld [vmem:[%s1681 + $0x98] sm:$0xff]
    %v1702 = vld [vmem:[%s1681 + $0xa0] sm:$0xff]
    %v1703 = vld [vmem:[%s1681 + $0xa8] sm:$0xff]
    %v1704 = vld [vmem:[%s1681 + $0xb0] sm:$0xff]
    %v1705 = vld [vmem:[%s1681 + $0xb8] sm:$0xff]
    %v1706 = vld [vmem:[%s1681 + $0xc0] sm:$0xff]
    %v1707 = vld [vmem:[%s1681 + $0xc8] sm:$0xff]
    %v1708 = vld [vmem:[%s1681 + $0xd0] sm:$0xff]
    %v1709 = vld [vmem:[%s1681 + $0xd8] sm:$0xff]
    %v1710 = vld [vmem:[%s1681 + $0xe0] sm:$0xff]
    %v1711 = vld [vmem:[%s1681 + $0xe8] sm:$0xff]
    %v1712 = vld [vmem:[%s1681 + $0xf0] sm:$0xff]
    %v1713 = vld [vmem:[%s1681 + $0xf8] sm:$0xff]
    %v1714 = vld [vmem:[%s1681 + $0x100] sm:$0xff]
    %v1715 = vld [vmem:[%s1681 + $0x108] sm:$0xff]
    %v1716 = vld [vmem:[%s1681 + $0x110] sm:$0xff]
    %v1717 = vld [vmem:[%s1681 + $0x118] sm:$0xff]
    %v1718 = vld [vmem:[%s1681 + $0x120] sm:$0xff]
    %v1719 = vld [vmem:[%s1681 + $0x128] sm:$0xff]
    %v1720 = vld [vmem:[%s1681 + $0x130] sm:$0xff]
    %v1721 = vld [vmem:[%s1681 + $0x138] sm:$0xff]
    %v1722 = vld [vmem:[%s1681 + $0x140] sm:$0xff]
    %v1723 = vld [vmem:[%s1681 + $0x148] sm:$0xff]
    %v1724 = vld [vmem:[%s1681 + $0x150] sm:$0xff]
    %v1725 = vld [vmem:[%s1681 + $0x158] sm:$0xff]
    %v1726 = vld [vmem:[%s1681 + $0x160] sm:$0xff]
    %v1727 = vld [vmem:[%s1681 + $0x168] sm:$0xff]
    %v1728 = vld [vmem:[%s1681 + $0x170] sm:$0xff]
    %v1729 = vld [vmem:[%s1681 + $0x178] sm:$0xff]
    %v1730 = vld [vmem:[%s1681 + $0x180] sm:$0xff]
    %v1731 = vld [vmem:[%s1681 + $0x188] sm:$0xff]
    %v1732 = vld [vmem:[%s1681 + $0x190] sm:$0xff]
    %v1733 = vld [vmem:[%s1681 + $0x198] sm:$0xff]
    %v1734 = vld [vmem:[%s1681 + $0x1a0] sm:$0xff]
    %v1735 = vld [vmem:[%s1681 + $0x1a8] sm:$0xff]
    %v1736 = vld [vmem:[%s1681 + $0x1b0] sm:$0xff]
    %v1737 = vld [vmem:[%s1681 + $0x1b8] sm:$0xff]
    %v1738 = vld [vmem:[%s1681 + $0x1c0] sm:$0xff]
    %v1739 = vld [vmem:[%s1681 + $0x1c8] sm:$0xff]
    %v1740 = vld [vmem:[%s1681 + $0x1d0] sm:$0xff]
    %v1741 = vld [vmem:[%s1681 + $0x1d8] sm:$0xff]
    %v1742 = vld [vmem:[%s1681 + $0x1e0] sm:$0xff]
    %v1743 = vld [vmem:[%s1681 + $0x1e8] sm:$0xff]
    %v1744 = vld [vmem:[%s1681 + $0x1f0] sm:$0xff]
    %v1745 = vld [vmem:[%s1681 + $0x1f8] sm:$0xff]
    %v1746 = vld [vmem:[%s1681 + $0x200] sm:$0xff]
    %v1747 = vld [vmem:[%s1681 + $0x208] sm:$0xff]
    %v1748 = vld [vmem:[%s1681 + $0x210] sm:$0xff]
    %v1749 = vld [vmem:[%s1681 + $0x218] sm:$0xff]
    %v1750 = vld [vmem:[%s1681 + $0x220] sm:$0xff]
    %v1751 = vld [vmem:[%s1681 + $0x228] sm:$0xff]
    %v1752 = vld [vmem:[%s1681 + $0x230] sm:$0xff]
    %v1753 = vld [vmem:[%s1681 + $0x238] sm:$0xff]
    %v1754 = vld [vmem:[%s1681 + $0x240] sm:$0xff]
    %v1755 = vld [vmem:[%s1681 + $0x248] sm:$0xff]
    %v1756 = vld [vmem:[%s1681 + $0x250] sm:$0xff]
    %v1757 = vld [vmem:[%s1681 + $0x258] sm:$0xff]
    %v1758 = vld [vmem:[%s1681 + $0x260] sm:$0xff]
    %v1759 = vld [vmem:[%s1681 + $0x268] sm:$0xff]
    %v1760 = vld [vmem:[%s1681 + $0x270] sm:$0xff]
    %v1761 = vld [vmem:[%s1681 + $0x278] sm:$0xff]
    %v1762 = vld [vmem:[%s1681 + $0x280] sm:$0xff]
    %v1763 = vld [vmem:[%s1681 + $0x288] sm:$0xff]
    %v1764 = vld [vmem:[%s1681 + $0x290] sm:$0xff]
    %v1765 = vld [vmem:[%s1681 + $0x298] sm:$0xff]
    %v1766 = vld [vmem:[%s1681 + $0x2a0] sm:$0xff]
    %v1767 = vld [vmem:[%s1681 + $0x2a8] sm:$0xff]
    %v1768 = vld [vmem:[%s1681 + $0x2b0] sm:$0xff]
    %v1769 = vld [vmem:[%s1681 + $0x2b8] sm:$0xff]
    %v1770 = vld [vmem:[%s1681 + $0x2c0] sm:$0xff]
    %v1771 = vld [vmem:[%s1681 + $0x2c8] sm:$0xff]
    %v1772 = vld [vmem:[%s1681 + $0x2d0] sm:$0xff]
    %v1773 = vld [vmem:[%s1681 + $0x2d8] sm:$0xff]
    %v1774 = vld [vmem:[%s1681 + $0x2e0] sm:$0xff]
    %v1775 = vld [vmem:[%s1681 + $0x2e8] sm:$0xff]
    %v1776 = vld [vmem:[%s1681 + $0x2f0] sm:$0xff]
    %v1777 = vld [vmem:[%s1681 + $0x2f8] sm:$0xff]
    %v1778 = vld [vmem:[%s1681 + $0x300] sm:$0xff]
    %v1779 = vld [vmem:[%s1681 + $0x308] sm:$0xff]
    %v1780 = vld [vmem:[%s1681 + $0x310] sm:$0xff]
    %v1781 = vld [vmem:[%s1681 + $0x318] sm:$0xff]
    %v1782 = vld [vmem:[%s1681 + $0x320] sm:$0xff]
    %v1783 = vld [vmem:[%s1681 + $0x328] sm:$0xff]
    %v1784 = vld [vmem:[%s1681 + $0x330] sm:$0xff]
    %v1785 = vld [vmem:[%s1681 + $0x338] sm:$0xff]
    %v1786 = vld [vmem:[%s1681 + $0x340] sm:$0xff]
    %v1787 = vld [vmem:[%s1681 + $0x348] sm:$0xff]
    %v1788 = vld [vmem:[%s1681 + $0x350] sm:$0xff]
    %v1789 = vld [vmem:[%s1681 + $0x358] sm:$0xff]
    %v1790 = vld [vmem:[%s1681 + $0x360] sm:$0xff]
    %v1791 = vld [vmem:[%s1681 + $0x368] sm:$0xff]
    %v1792 = vld [vmem:[%s1681 + $0x370] sm:$0xff]
    %v1793 = vld [vmem:[%s1681 + $0x378] sm:$0xf]
    %v1794 = vld [vmem:[%s1681 + $0x380] sm:$0xf]
    %v1795 = vld [vmem:[%s1681 + $0x388] sm:$0xf]
    %v1797 = vsel %vm186, %v1680, 0
    %v1800 = vsel %vm367, %v1793, 0
    %v1803 = vsel %vm367, %v1794, 0
    %v1806 = vsel %vm367, %v1795, 0
    %1808 = vmatprep.subr.mxu0 %v1683
    %1809 = vmatpush1.msra.mxu0 %v1682
    %1810 = vmatprep.subr.mxu0 %v1686
    %1811 = vmatpush1.msra.mxu0 %v1685
    %1812 = vmatprep.subr.mxu0 %v1689
    %1813 = vmatpush1.msra.mxu0 %v1688
    %1814 = vmatprep.subr.mxu0 %v1692
    %1815 = vmatpush1.msra.mxu0 %v1691
    %1816 = vmatprep.subr.mxu0 %v1695
    %1817 = vmatpush1.msra.mxu0 %v1694
    %1818 = vmatprep.subr.mxu0 %v1698
    %1819 = vmatpush1.msra.mxu0 %v1697
    %1820 = vmatprep.subr.mxu0 %v1701
    %1821 = vmatpush1.msra.mxu0 %v1700
    %1822 = vmatprep.subr.mxu0 %v1704
    %1823 = vmatpush1.msra.mxu0 %v1703
    %1824 = vmatprep.subr.mxu0 %v1707
    %1825 = vmatpush1.msra.mxu0 %v1706
    %1826 = vmatprep.subr.mxu0 %v1710
    %1827 = vmatpush1.msra.mxu0 %v1709
    %1828 = vmatprep.subr.mxu0 %v1713
    %1829 = vmatpush1.msra.mxu0 %v1712
    %1830 = vmatprep.subr.mxu0 %v1716
    %1831 = vmatpush1.msra.mxu0 %v1715
    %1832 = vmatprep.subr.mxu0 %v1719
    %1833 = vmatpush1.msra.mxu0 %v1718
    %1834 = vmatprep.subr.mxu0 %v1722
    %1835 = vmatpush1.msra.mxu0 %v1721
    %1836 = vmatprep.subr.mxu0 %v1725
    %1837 = vmatpush1.msra.mxu0 %v1724
    %1838 = vmatprep.subr.mxu0 %v1728
    %1839 = vmatpush1.msra.mxu0 %v1727
    %1840 = vmatprep.subr.mxu0 %v1731
    %1841 = vmatpush1.msra.mxu0 %v1730
    %1842 = vmatprep.subr.mxu0 %v1734
    %1843 = vmatpush1.msra.mxu0 %v1733
    %1844 = vmatprep.subr.mxu0 %v1737
    %1845 = vmatpush1.msra.mxu0 %v1736
    %1846 = vmatprep.subr.mxu0 %v1740
    %1847 = vmatpush1.msra.mxu0 %v1739
    %1848 = vmatprep.subr.mxu0 %v1743
    %1849 = vmatpush1.msra.mxu0 %v1742
    %1850 = vmatprep.subr.mxu0 %v1746
    %1851 = vmatpush1.msra.mxu0 %v1745
    %1852 = vmatprep.subr.mxu0 %v1749
    %1853 = vmatpush1.msra.mxu0 %v1748
    %1854 = vmatprep.subr.mxu0 %v1752
    %1855 = vmatpush1.msra.mxu0 %v1751
    %1856 = vmatprep.subr.mxu0 %v1755
    %1857 = vmatpush1.msra.mxu0 %v1754
    %1858 = vmatprep.subr.mxu0 %v1758
    %1859 = vmatpush1.msra.mxu0 %v1757
    %1860 = vmatprep.subr.mxu0 %v1761
    %1861 = vmatpush1.msra.mxu0 %v1760
    %1862 = vmatprep.subr.mxu0 %v1764
    %1863 = vmatpush1.msra.mxu0 %v1763
    %1864 = vmatprep.subr.mxu0 %v1767
    %1865 = vmatpush1.msra.mxu0 %v1766
    %1866 = vmatprep.subr.mxu0 %v1770
    %1867 = vmatpush1.msra.mxu0 %v1769
    %1868 = vmatprep.subr.mxu0 %v1773
    %1869 = vmatpush1.msra.mxu0 %v1772
    %1870 = vmatprep.subr.mxu0 %v1776
    %1871 = vmatpush1.msra.mxu0 %v1775
    %1872 = vmatprep.mubr.f32.mxu0 %v1679
    %1873 = vmatmul.mubr.f32.gmra.mrb[0].mxu0 %v1678
    %v1874 = vpop.f32.mrb[0].mxu0
    %v1875 = vadd.f32 %v1613, %v1874
    %v1876 = vpop.f32.mrb[0].mxu0
    %v1877 = vadd.f32 %v1614, %v1876
    %1878 = vdwg.mxu0
    %1879 = vmatprep.subr.mxu0 %v1779
    %1880 = vmatpush1.msra.mxu0 %v1778
    %1881 = vmatprep.subr.mxu0 %v1782
    %1882 = vmatpush1.msra.mxu0 %v1781
    %1883 = vmatprep.subr.mxu0 %v1785
    %1884 = vmatpush1.msra.mxu0 %v1784
    %1885 = vmatprep.subr.mxu0 %v1788
    %1886 = vmatpush1.msra.mxu0 %v1787
    %1887 = vmatprep.subr.mxu0 %v1791
    %1888 = vmatpush1.msra.mxu0 %v1790
    %1889 = vmatprep.subr.mxu0 %v1803
    %1890 = vmatpush1.msra.mxu0 %v1800
    %1891 = vmatprep.subr.mxu0 0.0
    %1892 = vmatpush1.msra.mxu0 0.0
    %1893 = vmatprep.subr.mxu0 0.0
    %1894 = vmatpush1.msra.mxu0 0.0
    %1895 = vmatprep.subr.mxu0 0.0
    %1896 = vmatpush1.msra.mxu0 0.0
    %1897 = vmatprep.subr.mxu0 0.0
    %1898 = vmatpush1.msra.mxu0 0.0
    %1899 = vmatprep.subr.mxu0 0.0
    %1900 = vmatpush1.msra.mxu0 0.0
    %1901 = vmatprep.subr.mxu0 0.0
    %1902 = vmatpush1.msra.mxu0 0.0
    %1903 = vmatprep.subr.mxu0 0.0
    %1904 = vmatpush1.msra.mxu0 0.0
    %1905 = vmatprep.subr.mxu0 0.0
    %1906 = vmatpush1.msra.mxu0 0.0
    %1907 = vmatprep.subr.mxu0 0.0
    %1908 = vmatpush1.msra.mxu0 0.0
    %1909 = vmatprep.subr.mxu0 0.0
    %1910 = vmatpush1.msra.mxu0 0.0
    %1911 = vmatprep.subr.mxu0 0.0
    %1912 = vmatpush1.msra.mxu0 0.0
    %1913 = vmatprep.subr.mxu0 0.0
    %1914 = vmatpush1.msra.mxu0 0.0
    %1915 = vmatprep.subr.mxu0 0.0
    %1916 = vmatpush1.msra.mxu0 0.0
    %1917 = vmatprep.subr.mxu0 0.0
    %1918 = vmatpush1.msra.mxu0 0.0
    %1919 = vmatprep.subr.mxu0 0.0
    %1920 = vmatpush1.msra.mxu0 0.0
    %1921 = vmatprep.subr.mxu0 0.0
    %1922 = vmatpush1.msra.mxu0 0.0
    %1923 = vmatprep.subr.mxu0 0.0
    %1924 = vmatpush1.msra.mxu0 0.0
    %1925 = vmatprep.subr.mxu0 0.0
    %1926 = vmatpush1.msra.mxu0 0.0
    %1927 = vmatprep.subr.mxu0 0.0
    %1928 = vmatpush1.msra.mxu0 0.0
    %1929 = vmatprep.subr.mxu0 0.0
    %1930 = vmatpush1.msra.mxu0 0.0
    %1931 = vmatprep.subr.mxu0 0.0
    %1932 = vmatpush1.msra.mxu0 0.0
    %1933 = vmatprep.subr.mxu0 0.0
    %1934 = vmatpush1.msra.mxu0 0.0
    %1935 = vmatprep.subr.mxu0 0.0
    %1936 = vmatpush1.msra.mxu0 0.0
    %1937 = vmatprep.subr.mxu0 0.0
    %1938 = vmatpush1.msra.mxu0 0.0
    %1939 = vmatprep.subr.mxu0 0.0
    %1940 = vmatpush1.msra.mxu0 0.0
    %1941 = vmatprep.subr.mxu0 0.0
    %1942 = vmatpush1.msra.mxu0 0.0
    %1943 = vmatprep.mubr.f32.mxu0 0.0
    %1944 = vmatmul.mubr.f32.gmra.mrb[0].mxu0 %v1797
    %v1945 = vpop.f32.mrb[0].mxu0
    %v1946 = vadd.f32 %v1875, %v1945
    %v1947 = vpop.f32.mrb[0].mxu0
    %v1948 = vadd.f32 %v1877, %v1947
    %1949 = vdwg.mxu0
    %1950 = vmatprep.subr.mxu0 0.0
    %1951 = vmatpush1.msra.mxu0 %v1684
    %1952 = vmatprep.subr.mxu0 0.0
    %1953 = vmatpush1.msra.mxu0 %v1687
    %1954 = vmatprep.subr.mxu0 0.0
    %1955 = vmatpush1.msra.mxu0 %v1690
    %1956 = vmatprep.subr.mxu0 0.0
    %1957 = vmatpush1.msra.mxu0 %v1693
    %1958 = vmatprep.subr.mxu0 0.0
    %1959 = vmatpush1.msra.mxu0 %v1696
    %1960 = vmatprep.subr.mxu0 0.0
    %1961 = vmatpush1.msra.mxu0 %v1699
    %1962 = vmatprep.subr.mxu0 0.0
    %1963 = vmatpush1.msra.mxu0 %v1702
    %1964 = vmatprep.subr.mxu0 0.0
    %1965 = vmatpush1.msra.mxu0 %v1705
    %1966 = vmatprep.subr.mxu0 0.0
    %1967 = vmatpush1.msra.mxu0 %v1708
    %1968 = vmatprep.subr.mxu0 0.0
    %1969 = vmatpush1.msra.mxu0 %v1711
    %1970 = vmatprep.subr.mxu0 0.0
    %1971 = vmatpush1.msra.mxu0 %v1714
    %1972 = vmatprep.subr.mxu0 0.0
    %1973 = vmatpush1.msra.mxu0 %v1717
    %1974 = vmatprep.subr.mxu0 0.0
    %1975 = vmatpush1.msra.mxu0 %v1720
    %1976 = vmatprep.subr.mxu0 0.0
    %1977 = vmatpush1.msra.mxu0 %v1723
    %1978 = vmatprep.subr.mxu0 0.0
    %1979 = vmatpush1.msra.mxu0 %v1726
    %1980 = vmatprep.subr.mxu0 0.0
    %1981 = vmatpush1.msra.mxu0 %v1729
    %1982 = vmatprep.subr.mxu0 0.0
    %1983 = vmatpush1.msra.mxu0 %v1732
    %1984 = vmatprep.subr.mxu0 0.0
    %1985 = vmatpush1.msra.mxu0 %v1735
    %1986 = vmatprep.subr.mxu0 0.0
    %1987 = vmatpush1.msra.mxu0 %v1738
    %1988 = vmatprep.subr.mxu0 0.0
    %1989 = vmatpush1.msra.mxu0 %v1741
    %1990 = vmatprep.subr.mxu0 0.0
    %1991 = vmatpush1.msra.mxu0 %v1744
    %1992 = vmatprep.subr.mxu0 0.0
    %1993 = vmatpush1.msra.mxu0 %v1747
    %1994 = vmatprep.subr.mxu0 0.0
    %1995 = vmatpush1.msra.mxu0 %v1750
    %1996 = vmatprep.subr.mxu0 0.0
    %1997 = vmatpush1.msra.mxu0 %v1753
    %1998 = vmatprep.subr.mxu0 0.0
    %1999 = vmatpush1.msra.mxu0 %v1756
    %2000 = vmatprep.subr.mxu0 0.0
    %2001 = vmatpush1.msra.mxu0 %v1759
    %2002 = vmatprep.subr.mxu0 0.0
    %2003 = vmatpush1.msra.mxu0 %v1762
    %2004 = vmatprep.subr.mxu0 0.0
    %2005 = vmatpush1.msra.mxu0 %v1765
    %2006 = vmatprep.subr.mxu0 0.0
    %2007 = vmatpush1.msra.mxu0 %v1768
    %2008 = vmatprep.subr.mxu0 0.0
    %2009 = vmatpush1.msra.mxu0 %v1771
    %2010 = vmatprep.subr.mxu0 0.0
    %2011 = vmatpush1.msra.mxu0 %v1774
    %2012 = vmatprep.subr.mxu0 0.0
    %2013 = vmatpush1.msra.mxu0 %v1777
    %2014 = vmatprep.mubr.f32.mxu0 %v1679
    %2015 = vmatmul.mubr.f32.gmra.mrb[0].mxu0 %v1678
    %v2016 = vpop.f32.mrb[0].mxu0
    %v2017 = vadd.f32 %v1615, %v2016
    %v2018 = vpop.f32.mrb[0].mxu0
    %2019 = vdwg.mxu0
    %2020 = vmatprep.subr.mxu0 0.0
    %2021 = vmatpush1.msra.mxu0 %v1780
    %2022 = vmatprep.subr.mxu0 0.0
    %2023 = vmatpush1.msra.mxu0 %v1783
    %2024 = vmatprep.subr.mxu0 0.0
    %2025 = vmatpush1.msra.mxu0 %v1786
    %2026 = vmatprep.subr.mxu0 0.0
    %2027 = vmatpush1.msra.mxu0 %v1789
    %2028 = vmatprep.subr.mxu0 0.0
    %2029 = vmatpush1.msra.mxu0 %v1792
    %2030 = vmatprep.subr.mxu0 0.0
    %2031 = vmatpush1.msra.mxu0 %v1806
    %2032 = vmatprep.subr.mxu0 0.0
    %2033 = vmatpush1.msra.mxu0 0.0
    %2034 = vmatprep.subr.mxu0 0.0
    %2035 = vmatpush1.msra.mxu0 0.0
    %2036 = vmatprep.subr.mxu0 0.0
    %2037 = vmatpush1.msra.mxu0 0.0
    %2038 = vmatprep.subr.mxu0 0.0
    %2039 = vmatpush1.msra.mxu0 0.0
    %2040 = vmatprep.subr.mxu0 0.0
    %2041 = vmatpush1.msra.mxu0 0.0
    %2042 = vmatprep.subr.mxu0 0.0
    %2043 = vmatpush1.msra.mxu0 0.0
    %2044 = vmatprep.subr.mxu0 0.0
    %2045 = vmatpush1.msra.mxu0 0.0
    %2046 = vmatprep.subr.mxu0 0.0
    %2047 = vmatpush1.msra.mxu0 0.0
    %2048 = vmatprep.subr.mxu0 0.0
    %2049 = vmatpush1.msra.mxu0 0.0
    %2050 = vmatprep.subr.mxu0 0.0
    %2051 = vmatpush1.msra.mxu0 0.0
    %2052 = vmatprep.subr.mxu0 0.0
    %2053 = vmatpush1.msra.mxu0 0.0
    %2054 = vmatprep.subr.mxu0 0.0
    %2055 = vmatpush1.msra.mxu0 0.0
    %2056 = vmatprep.subr.mxu0 0.0
    %2057 = vmatpush1.msra.mxu0 0.0
    %2058 = vmatprep.subr.mxu0 0.0
    %2059 = vmatpush1.msra.mxu0 0.0
    %2060 = vmatprep.subr.mxu0 0.0
    %2061 = vmatpush1.msra.mxu0 0.0
    %2062 = vmatprep.subr.mxu0 0.0
    %2063 = vmatpush1.msra.mxu0 0.0
    %2064 = vmatprep.subr.mxu0 0.0
    %2065 = vmatpush1.msra.mxu0 0.0
    %2066 = vmatprep.subr.mxu0 0.0
    %2067 = vmatpush1.msra.mxu0 0.0
    %2068 = vmatprep.subr.mxu0 0.0
    %2069 = vmatpush1.msra.mxu0 0.0
    %2070 = vmatprep.subr.mxu0 0.0
    %2071 = vmatpush1.msra.mxu0 0.0
    %2072 = vmatprep.subr.mxu0 0.0
    %2073 = vmatpush1.msra.mxu0 0.0
    %2074 = vmatprep.subr.mxu0 0.0
    %2075 = vmatpush1.msra.mxu0 0.0
    %2076 = vmatprep.subr.mxu0 0.0
    %2077 = vmatpush1.msra.mxu0 0.0
    %2078 = vmatprep.subr.mxu0 0.0
    %2079 = vmatpush1.msra.mxu0 0.0
    %2080 = vmatprep.subr.mxu0 0.0
    %2081 = vmatpush1.msra.mxu0 0.0
    %2082 = vmatprep.subr.mxu0 0.0
    %2083 = vmatpush1.msra.mxu0 0.0
    %2084 = vmatprep.mubr.f32.mxu0 0.0
    %2085 = vmatmul.mubr.f32.gmra.mrb[0].mxu0 %v1797
    %v2086 = vpop.f32.mrb[0].mxu0
    %v2087 = vadd.f32 %v2017, %v2086
    %v2088 = vpop.f32.mrb[0].mxu0
    %2089 = vdwg.mxu0
    %v2090 = vtanh.pop %v1946
    %v2091 = vtanh.pop %v1948
    %v2092 = vtanh.pop %v2087
    %v2093 = vld [vmem:[%s5] sm:$0xff]
    %v2094 = vld [vmem:[%s5 + $0x8] sm:$0xff]
    %v2095 = vld [vmem:[%s5 + $0x10] sm:$0xff]
    %v2096 = vld [vmem:[%s5 + $0x18] sm:$0xff]
    %v2097 = vld [vmem:[%s5 + $0x20] sm:$0xff]
    %v2098 = vld [vmem:[%s5 + $0x28] sm:$0xff]
    %v2099 = vld [vmem:[%s5 + $0x30] sm:$0xff]
    %v2100 = vld [vmem:[%s5 + $0x38] sm:$0xff]
    %v2101 = vld [vmem:[%s5 + $0x40] sm:$0xff]
    %v2102 = vld [vmem:[%s5 + $0x48] sm:$0xff]
    %v2103 = vld [vmem:[%s5 + $0x50] sm:$0xff]
    %v2104 = vld [vmem:[%s5 + $0x58] sm:$0xff]
    %v2105 = vld [vmem:[%s5 + $0x60] sm:$0xff]
    %v2106 = vld [vmem:[%s5 + $0x68] sm:$0xff]
    %v2107 = vld [vmem:[%s5 + $0x70] sm:$0xff]
    %v2108 = vld [vmem:[%s5 + $0x78] sm:$0xff]
    %v2109 = vld [vmem:[%s5 + $0x80] sm:$0xff]
    %v2110 = vld [vmem:[%s5 + $0x88] sm:$0xff]
    %v2111 = vld [vmem:[%s5 + $0x90] sm:$0xff]
    %v2112 = vld [vmem:[%s5 + $0x98] sm:$0xff]
    %v2113 = vld [vmem:[%s5 + $0xa0] sm:$0xff]
    %v2114 = vld [vmem:[%s5 + $0xa8] sm:$0xff]
    %v2115 = vld [vmem:[%s5 + $0xb0] sm:$0xff]
    %v2116 = vld [vmem:[%s5 + $0xb8] sm:$0xff]
    %v2117 = vld [vmem:[%s5 + $0xc0] sm:$0xff]
    %v2118 = vld [vmem:[%s5 + $0xc8] sm:$0xff]
    %v2119 = vld [vmem:[%s5 + $0xd0] sm:$0xff]
    %v2120 = vld [vmem:[%s5 + $0xd8] sm:$0xff]
    %v2121 = vld [vmem:[%s5 + $0xe0] sm:$0xff]
    %v2122 = vld [vmem:[%s5 + $0xe8] sm:$0xff]
    %v2123 = vld [vmem:[%s5 + $0xf0] sm:$0xff]
    %v2124 = vld [vmem:[%s5 + $0xf8] sm:$0xff]
    %v2125 = vld [vmem:[%s5 + $0x100] sm:$0xff]
    %v2126 = vld [vmem:[%s5 + $0x108] sm:$0xff]
    %v2127 = vld [vmem:[%s5 + $0x110] sm:$0xff]
    %v2128 = vld [vmem:[%s5 + $0x118] sm:$0xff]
    %v2129 = vld [vmem:[%s5 + $0x120] sm:$0xff]
    %v2130 = vld [vmem:[%s5 + $0x128] sm:$0xf]
    %v2132 = vsel %vm186, %v2092, 0
    %v2135 = vsel %vm367, %v2130, 0
    %2137 = vmatprep.subr.mxu0 0.0
    %2138 = vmatpush1.msra.mxu0 %v2093
    %2139 = vmatprep.subr.mxu0 0.0
    %2140 = vmatpush1.msra.mxu0 %v2094
    %2141 = vmatprep.subr.mxu0 0.0
    %2142 = vmatpush1.msra.mxu0 %v2095
    %2143 = vmatprep.subr.mxu0 0.0
    %2144 = vmatpush1.msra.mxu0 %v2096
    %2145 = vmatprep.subr.mxu0 0.0
    %2146 = vmatpush1.msra.mxu0 %v2097
    %2147 = vmatprep.subr.mxu0 0.0
    %2148 = vmatpush1.msra.mxu0 %v2098
    %2149 = vmatprep.subr.mxu0 0.0
    %2150 = vmatpush1.msra.mxu0 %v2099
    %2151 = vmatprep.subr.mxu0 0.0
    %2152 = vmatpush1.msra.mxu0 %v2100
    %2153 = vmatprep.subr.mxu0 0.0
    %2154 = vmatpush1.msra.mxu0 %v2101
    %2155 = vmatprep.subr.mxu0 0.0
    %2156 = vmatpush1.msra.mxu0 %v2102
    %2157 = vmatprep.subr.mxu0 0.0
    %2158 = vmatpush1.msra.mxu0 %v2103
    %2159 = vmatprep.subr.mxu0 0.0
    %2160 = vmatpush1.msra.mxu0 %v2104
    %2161 = vmatprep.subr.mxu0 0.0
    %2162 = vmatpush1.msra.mxu0 %v2105
    %2163 = vmatprep.subr.mxu0 0.0
    %2164 = vmatpush1.msra.mxu0 %v2106
    %2165 = vmatprep.subr.mxu0 0.0
    %2166 = vmatpush1.msra.mxu0 %v2107
    %2167 = vmatprep.subr.mxu0 0.0
    %2168 = vmatpush1.msra.mxu0 %v2108
    %2169 = vmatprep.subr.mxu0 0.0
    %2170 = vmatpush1.msra.mxu0 %v2109
    %2171 = vmatprep.subr.mxu0 0.0
    %2172 = vmatpush1.msra.mxu0 %v2110
    %2173 = vmatprep.subr.mxu0 0.0
    %2174 = vmatpush1.msra.mxu0 %v2111
    %2175 = vmatprep.subr.mxu0 0.0
    %2176 = vmatpush1.msra.mxu0 %v2112
    %2177 = vmatprep.subr.mxu0 0.0
    %2178 = vmatpush1.msra.mxu0 %v2113
    %2179 = vmatprep.subr.mxu0 0.0
    %2180 = vmatpush1.msra.mxu0 %v2114
    %2181 = vmatprep.subr.mxu0 0.0
    %2182 = vmatpush1.msra.mxu0 %v2115
    %2183 = vmatprep.subr.mxu0 0.0
    %2184 = vmatpush1.msra.mxu0 %v2116
    %2185 = vmatprep.subr.mxu0 0.0
    %2186 = vmatpush1.msra.mxu0 %v2117
    %2187 = vmatprep.subr.mxu0 0.0
    %2188 = vmatpush1.msra.mxu0 %v2118
    %2189 = vmatprep.subr.mxu0 0.0
    %2190 = vmatpush1.msra.mxu0 %v2119
    %2191 = vmatprep.subr.mxu0 0.0
    %2192 = vmatpush1.msra.mxu0 %v2120
    %2193 = vmatprep.subr.mxu0 0.0
    %2194 = vmatpush1.msra.mxu0 %v2121
    %2195 = vmatprep.subr.mxu0 0.0
    %2196 = vmatpush1.msra.mxu0 %v2122
    %2197 = vmatprep.subr.mxu0 0.0
    %2198 = vmatpush1.msra.mxu0 %v2123
    %2199 = vmatprep.subr.mxu0 0.0
    %2200 = vmatpush1.msra.mxu0 %v2124
    %2201 = vmatprep.mubr.f32.mxu0 %v2091
    %2202 = vmatmul.mubr.f32.gmra.mrb[0].mxu0 %v2090
    %v2203 = vpop.f32.mrb[0].mxu0
    %v2204 = vadd.f32 0.0, %v2203
    %v2205 = vpop.f32.mrb[0].mxu0
    %2206 = vdwg.mxu0
    %2207 = vmatprep.subr.mxu0 0.0
    %2208 = vmatpush1.msra.mxu0 %v2125
    %2209 = vmatprep.subr.mxu0 0.0
    %2210 = vmatpush1.msra.mxu0 %v2126
    %2211 = vmatprep.subr.mxu0 0.0
    %2212 = vmatpush1.msra.mxu0 %v2127
    %2213 = vmatprep.subr.mxu0 0.0
    %2214 = vmatpush1.msra.mxu0 %v2128
    %2215 = vmatprep.subr.mxu0 0.0
    %2216 = vmatpush1.msra.mxu0 %v2129
    %2217 = vmatprep.subr.mxu0 0.0
    %2218 = vmatpush1.msra.mxu0 %v2135
    %2219 = vmatprep.subr.mxu0 0.0
    %2220 = vmatpush1.msra.mxu0 0.0
    %2221 = vmatprep.subr.mxu0 0.0
    %2222 = vmatpush1.msra.mxu0 0.0
    %2223 = vmatprep.subr.mxu0 0.0
    %2224 = vmatpush1.msra.mxu0 0.0
    %2225 = vmatprep.subr.mxu0 0.0
    %2226 = vmatpush1.msra.mxu0 0.0
    %2227 = vmatprep.subr.mxu0 0.0
    %2228 = vmatpush1.msra.mxu0 0.0
    %2229 = vmatprep.subr.mxu0 0.0
    %2230 = vmatpush1.msra.mxu0 0.0
    %2231 = vmatprep.subr.mxu0 0.0
    %2232 = vmatpush1.msra.mxu0 0.0
    %2233 = vmatprep.subr.mxu0 0.0
    %2234 = vmatpush1.msra.mxu0 0.0
    %2235 = vmatprep.subr.mxu0 0.0
    %2236 = vmatpush1.msra.mxu0 0.0
    %2237 = vmatprep.subr.mxu0 0.0
    %2238 = vmatpush1.msra.mxu0 0.0
    %2239 = vmatprep.subr.mxu0 0.0
    %2240 = vmatpush1.msra.mxu0 0.0
    %2241 = vmatprep.subr.mxu0 0.0
    %2242 = vmatpush1.msra.mxu0 0.0
    %2243 = vmatprep.subr.mxu0 0.0
    %2244 = vmatpush1.msra.mxu0 0.0
    %2245 = vmatprep.subr.mxu0 0.0
    %2246 = vmatpush1.msra.mxu0 0.0
    %2247 = vmatprep.subr.mxu0 0.0
    %2248 = vmatpush1.msra.mxu0 0.0
    %2249 = vmatprep.subr.mxu0 0.0
    %2250 = vmatpush1.msra.mxu0 0.0
    %2251 = vmatprep.subr.mxu0 0.0
    %2252 = vmatpush1.msra.mxu0 0.0
    %2253 = vmatprep.subr.mxu0 0.0
    %2254 = vmatpush1.msra.mxu0 0.0
    %2255 = vmatprep.subr.mxu0 0.0
    %2256 = vmatpush1.msra.mxu0 0.0
    %2257 = vmatprep.subr.mxu0 0.0
    %2258 = vmatpush1.msra.mxu0 0.0
    %2259 = vmatprep.subr.mxu0 0.0
    %2260 = vmatpush1.msra.mxu0 0.0
    %2261 = vmatprep.subr.mxu0 0.0
    %2262 = vmatpush1.msra.mxu0 0.0
    %2263 = vmatprep.subr.mxu0 0.0
    %2264 = vmatpush1.msra.mxu0 0.0
    %2265 = vmatprep.subr.mxu0 0.0
    %2266 = vmatpush1.msra.mxu0 0.0
    %2267 = vmatprep.subr.mxu0 0.0
    %2268 = vmatpush1.msra.mxu0 0.0
    %2269 = vmatprep.subr.mxu0 0.0
    %2270 = vmatpush1.msra.mxu0 0.0
    %2271 = vmatprep.mubr.f32.mxu0 0.0
    %2272 = vmatmul.mubr.f32.gmra.mrb[0].mxu0 %v2132
    %v2273 = vpop.f32.mrb[0].mxu0
    %v2274 = vadd.f32 %v2204, %v2273
    %v2275 = vpop.f32.mrb[0].mxu0
    %2276 = vdwg.mxu0
    %vm2277 = vcmask 80896
    %2278 = vst.msk [vmem:[#allocation2] sm:$0xff] %vm2277, %v2274
    // Predicated region
    $region26: #{tpu_custom_call.1} parent=1 // pred_check
      _
    $region27: #{tpu_custom_call.1} parent=1 // pred_check_branch
      %2280 = sbr.rel (0) target = $region29
    $region28: #{tpu_custom_call.1} parent=1 // pred_region
      %s2282 = ssub.s32 128, 128
      %2283 = vsyncadd [#allocation3], %s2282
      %s2285 = sshll.u32 [#allocation2], 4
      %s2286 = int_to_ptr.vmem [resolvable:$true] %s2285
      %2288 = dma.vmem_to_hbm [thread:$0]  %s2286, 128, %s6, [#allocation3]
    $region29: #{tpu_custom_call.1} parent=1 // pred_fallthru
      _
    // Predicated region
    $region30: #{tpu_custom_call.1} parent=1 // pred_check
      _
    $region31: #{tpu_custom_call.1} parent=1 // pred_check_branch
      %2290 = sbr.rel (0) target = $region33
    $region32: #{tpu_custom_call.1} parent=1 // pred_region
      %2291 = dma.done [#allocation3], 128
    $region33: #{tpu_custom_call.1} parent=1 // pred_fallthru
      _
    %2292 = vsyncpa [#allocation3], 1

</llo_original>
